<compile_context>
chip_gen: v6e
topology: v6e:2x2x1
jax: 0.10.0
libtpu: 0.0.40
codegen_flags: <defaults>
</compile_context>

<pallas_src>
import functools

import jax
import jax.numpy as jnp
import numpy as np
from jax.experimental import pallas as pl
from jax.experimental.pallas import tpu as pltpu


def _rec_block_kernel(alpha_ref, x_ref,
                      w1_ref, b1_ref, w2_ref, b2_ref,
                      w3_ref, b3_ref, w4_ref, b4_ref,
                      out_ref, rhs_ref, *, H, W, res, compute_dtype):
    """Fused conv3x3+PReLU x3 -> conv3x3 (+residual) for one image.

    alpha_ref : (3,) f32 (SMEM)          PReLU slopes
    x_ref     : (1, Cin, N)              flattened input image, N = H*W
    w*_ref    : (Co, 9*Ci) compute_dtype flattened tap-major weights
    b*_ref    : (Co, 1) f32              biases
    out_ref   : (1, Cout, N)
    rhs_ref   : (9*Cmax, N) compute_dtype  im2col staging scratch (VMEM)
    """
    N = x_ref.shape[-1]

    # ---- border masks, built once per grid step from a single lane iota ----
    # Row checks need no division; the column index uses an exact float
    # reciprocal trick (exact for H*W < 2^22) to avoid vector integer div/mod.
    q = jax.lax.broadcasted_iota(jnp.int32, (1, N), 1)
    rowq = jnp.floor((q.astype(jnp.float32) + 0.5) * (1.0 / W)).astype(jnp.int32)
    col = q - rowq * W
    row_ok = {-1: q >= W, 1: q < (H - 1) * W}          # input row in [0, H)
    col_ok = {-1: col >= 1, 1: col < (W - 1)}          # input col in [0, W)

    def tap_mask(dh, dw):
        m = None
        for c in ((row_ok[dh] if dh else None), (col_ok[dw] if dw else None)):
            if c is None:
                continue
            m = c if m is None else jnp.logical_and(m, c)
        return m.astype(jnp.float32)                    # (1, N) 0/1

    masks = {k: tap_mask(k // 3 - 1, k % 3 - 1) for k in range(9) if k != 4}

    def conv3x3(p, w_ref_l, b_ref_l, alpha):
        """p: (Ci, N) f32.  Whole 3x3 'same' conv as a single MXU matmul."""
        co, kdim = w_ref_l.shape
        ci = kdim // 9
        # Stack the 9 taps along the contraction dim (im2col on the fly):
        #   rhs[k*ci:(k+1)*ci, :] = mask_k * roll(p, tap-k shift)
        rhs_ref[pl.ds(4 * ci, ci), :] = p.astype(compute_dtype)   # centre: no mask
        for k in range(9):
            if k == 4:
                continue
            dh, dw = k // 3 - 1, k % 3 - 1
            shift = dh * W + dw
            # rolled[:, q] = p[:, (q + shift) mod N]; wrap lands on masked lanes.
            rolled = pltpu.roll(p, (-shift) % N, 1)
            rhs_ref[pl.ds(k * ci, ci), :] = (rolled * masks[k]).astype(compute_dtype)
        acc = jnp.dot(w_ref_l[...], rhs_ref[pl.ds(0, kdim), :],
                      preferred_element_type=jnp.float32)          # (co, N) f32
        acc = acc + b_ref_l[...]                                   # (co, 1) bcast
        if alpha is not None:
            acc = jnp.where(acc > 0, acc, alpha * acc)             # PReLU
        return acc

    x0 = x_ref[0].astype(jnp.float32)                              # (Cin, N)
    h = conv3x3(x0, w1_ref, b1_ref, alpha_ref[0])
    h = conv3x3(h, w2_ref, b2_ref, alpha_ref[1])
    h = conv3x3(h, w3_ref, b3_ref, alpha_ref[2])
    h = conv3x3(h, w4_ref, b4_ref, None)
    if res:
        h = h + x_ref[0].astype(jnp.float32)
    out_ref[0] = h.astype(out_ref.dtype)


def rec_block_forward(x_nchw, weights, biases, alphas, *, res=False,
                      compute_dtype=jnp.float32, out_dtype=None):
    """weights: 4 HWIO (3,3,Ci,Co) arrays; biases: 4 (Co,) arrays; alphas: (3,)."""
    B, Cin, H, W = x_nchw.shape
    N = H * W
    if N >= (1 << 22):
        # TODO(synk): spatial row-tiling with real 4-row halos for huge images.
        raise NotImplementedError("single-block kernel supports H*W < 2^22")
    out_dtype = jnp.dtype(x_nchw.dtype) if out_dtype is None else jnp.dtype(out_dtype)

    # Free row-major reshape (no transpose, no cast): lane-dense (B, C, H*W).
    x_flat = x_nchw.reshape(B, Cin, N)

    w_flat, b_col = [], []
    ci = Cin
    for w_hwio, b in zip(weights, biases):
        kh, kw, wci, co = w_hwio.shape
        assert (kh, kw, wci) == (3, 3, ci), "expected chained 3x3 HWIO weights"
        # (3,3,Ci,Co) -> (Co, 9*Ci): tap-major, ready-to-use lane-dense MXU lhs.
        w_flat.append(jnp.transpose(w_hwio, (3, 0, 1, 2)).reshape(co, 9 * ci)
                      .astype(compute_dtype))
        b_col.append(jnp.asarray(b, jnp.float32).reshape(co, 1))
        ci = co
    Cout = ci
    mid = b_col[0].shape[0]
    if res and Cout != Cin:
        raise ValueError("residual connection requires out_c == in_c")
    cmax = max(Cin, mid)

    alphas_arr = jnp.asarray(alphas, jnp.float32).reshape(3)

    kernel = functools.partial(_rec_block_kernel, H=H, W=W, res=res,
                               compute_dtype=compute_dtype)

    in_specs = [
        # PReLU slopes: scalars belong on the scalar path, not a padded VMEM tile.
        pl.BlockSpec(memory_space=pltpu.MemorySpace.SMEM),
        pl.BlockSpec((1, Cin, N), lambda b: (b, 0, 0)),     # input image b
    ]
    args = [alphas_arr, x_flat]
    for wf, bc in zip(w_flat, b_col):
        # Constant index maps: the pipeline fetches these once for the whole grid.
        in_specs.append(pl.BlockSpec(wf.shape, lambda b: (0, 0)))
        in_specs.append(pl.BlockSpec(bc.shape, lambda b: (0, 0)))
        args += [wf, bc]

    # VMEM budget: double-buffered image in/out + weights/biases, the im2col
    # staging scratch, and a few live (cmax, N) f32 temporaries; 2x headroom.
    bpe_c = jnp.dtype(compute_dtype).itemsize
    est = (2 * Cin * N * jnp.dtype(x_nchw.dtype).itemsize
           + 2 * Cout * N * out_dtype.itemsize
           + 2 * sum(int(np.prod(w.shape)) * bpe_c for w in w_flat)
           + 2 * sum(int(np.prod(b.shape)) * 4 for b in b_col)
           + 9 * cmax * N * bpe_c
           + 8 * cmax * N * 4)
    vmem_limit = int(min(max(2 * est, 32 * 1024 * 1024), 110 * 1024 * 1024))

    out_flat = pl.pallas_call(
        kernel,
        out_shape=jax.ShapeDtypeStruct((B, Cout, N), out_dtype),
        grid=(B,),
        in_specs=in_specs,
        out_specs=pl.BlockSpec((1, Cout, N), lambda b: (b, 0, 0)),
        scratch_shapes=[pltpu.VMEM((9 * cmax, N), compute_dtype)],
        compiler_params=pltpu.CompilerParams(
            dimension_semantics=("parallel",),          # images are independent
            vmem_limit_bytes=vmem_limit),
    )(*args)
    return out_flat.reshape(B, Cout, H, W)


class RecBlockPallas:
    """JAX/Pallas port of Rec_block(out_c, in_c, mid_c, res) from FDSR_wStep."""

    def __init__(self, out_c, in_c, mid_c, res=False, key=None,
                 compute_dtype=jnp.float32):
        self.res = res
        self.compute_dtype = compute_dtype
        key = jax.random.PRNGKey(42) if key is None else key
        ks = jax.random.split(key, 8)

        def w_init(k, ci, co):
            scale = 1.0 / np.sqrt(ci * 9)
            return jax.random.normal(k, (3, 3, ci, co), jnp.float32) * scale

        def b_init(k, co):
            return jax.random.normal(k, (co,), jnp.float32) * 0.01

        self.weights = [w_init(ks[0], in_c, mid_c), w_init(ks[2], mid_c, mid_c),
                        w_init(ks[4], mid_c, mid_c), w_init(ks[6], mid_c, out_c)]
        self.biases = [b_init(ks[1], mid_c), b_init(ks[3], mid_c),
                       b_init(ks[5], mid_c), b_init(ks[7], out_c)]
        # nn.PReLU() default: one shared slope per activation, init 0.25.
        self.alphas = jnp.array([0.25, 0.25, 0.25], jnp.float32)

    def forward(self, x_nchw, compute_dtype=None):
        cd = self.compute_dtype if compute_dtype is None else compute_dtype
        return rec_block_forward(x_nchw, self.weights, self.biases, self.alphas,
                                 res=self.res, compute_dtype=cd)

    def __call__(self, x_nchw):
        return self.forward(x_nchw)


# ---------------------------------------------------------------------------
# Pure-JAX reference (correctness check only)
# ---------------------------------------------------------------------------
def _ref_forward(block, x_nchw):
    def conv(x, w_hwio, b, alpha=None):
        w_oihw = jnp.transpose(w_hwio, (3, 2, 0, 1))
        y = jax.lax.conv_general_dilated(
            x, w_oihw, window_strides=(1, 1), padding=((1, 1), (1, 1)),
            dimension_numbers=("NCHW", "OIHW", "NCHW"))
        y = y + b[None, :, None, None]
        if alpha is not None:
            y = jnp.where(y > 0, y, alpha * y)
        return y

    x_ori = x_nchw
    x = conv(x_nchw, block.weights[0], block.biases[0], block.alphas[0])
    x = conv(x, block.weights[1], block.biases[1], block.alphas[1])
    x = conv(x, block.weights[2], block.biases[2], block.alphas[2])
    x = conv(x, block.weights[3], block.biases[3], None)
    return x + x_ori if block.res else x


if __name__ == "__main__":
    B, in_c, mid_c, out_c, HW = 2, 4, 8, 4, 16
    x = jax.random.normal(jax.random.PRNGKey(0), (B, in_c, HW, HW), jnp.float32)

    block = RecBlockPallas(out_c=out_c, in_c=in_c, mid_c=mid_c, res=True,
                           key=jax.random.PRNGKey(7))
    y_ref = _ref_forward(block, x)

    # f32 compute path: tight check against the XLA conv reference.
    y = jax.block_until_ready(jax.jit(block.__call__)(x))
    np.testing.assert_allclose(np.asarray(y), np.asarray(y_ref),
                               rtol=5e-4, atol=5e-4)

    # bf16 MXU-operand path, f32 in/out (f32 accumulation / bias / PReLU / residual).
    y_bf16 = jax.block_until_ready(
        jax.jit(lambda t: block.forward(t, compute_dtype=jnp.bfloat16))(x))
    np.testing.assert_allclose(np.asarray(y_bf16), np.asarray(y_ref),
                               rtol=1e-1, atol=1e-1)

    # bf16 end-to-end (bf16 input -> bf16 output): halves in/out HBM traffic.
    y_b2b = jax.block_until_ready(
        jax.jit(lambda t: block.forward(t, compute_dtype=jnp.bfloat16))(
            x.astype(jnp.bfloat16)))
    assert y_b2b.dtype == jnp.bfloat16
    np.testing.assert_allclose(np.asarray(y_b2b.astype(jnp.float32)),
                               np.asarray(y_ref), rtol=2e-1, atol=2e-1)

    print("KERNEL_OK")
</pallas_src>

<mosaic_0001>
module attributes {stable_mosaic.version = 11 : i64} {
  func.func @_rec_block_kernel(%arg0: i32, %arg1: memref<3xf32, #tpu.memory_space<smem>>, %arg2: memref<1x4x256xf32, #tpu.memory_space<vmem>>, %arg3: memref<8x36xf32, #tpu.memory_space<vmem>>, %arg4: memref<8x1xf32, #tpu.memory_space<vmem>>, %arg5: memref<8x72xf32, #tpu.memory_space<vmem>>, %arg6: memref<8x1xf32, #tpu.memory_space<vmem>>, %arg7: memref<8x72xf32, #tpu.memory_space<vmem>>, %arg8: memref<8x1xf32, #tpu.memory_space<vmem>>, %arg9: memref<4x72xf32, #tpu.memory_space<vmem>>, %arg10: memref<4x1xf32, #tpu.memory_space<vmem>>, %arg11: memref<1x4x256xf32, #tpu.memory_space<vmem>>, %arg12: memref<72x256xf32, #tpu.memory_space<vmem>>) attributes {dimension_semantics = [#tpu.dimension_semantics<parallel>], iteration_bounds = array<i64: 2>, scalar_prefetch = 0 : i64, scratch_operands = 1 : i64, tpu.core_type = #tpu.core_type<tc>, window_params = [{transform_indices = @transform_0, window_bounds = array<i64: 3>}, {transform_indices = @transform_1, window_bounds = array<i64: 1, 4, 256>}, {pipeline_mode = #tpu.pipeline_mode<synchronous>, transform_indices = @transform_2, window_bounds = array<i64: 8, 36>}, {pipeline_mode = #tpu.pipeline_mode<synchronous>, transform_indices = @transform_3, window_bounds = array<i64: 8, 1>}, {pipeline_mode = #tpu.pipeline_mode<synchronous>, transform_indices = @transform_4, window_bounds = array<i64: 8, 72>}, {pipeline_mode = #tpu.pipeline_mode<synchronous>, transform_indices = @transform_5, window_bounds = array<i64: 8, 1>}, {pipeline_mode = #tpu.pipeline_mode<synchronous>, transform_indices = @transform_6, window_bounds = array<i64: 8, 72>}, {pipeline_mode = #tpu.pipeline_mode<synchronous>, transform_indices = @transform_7, window_bounds = array<i64: 8, 1>}, {pipeline_mode = #tpu.pipeline_mode<synchronous>, transform_indices = @transform_8, window_bounds = array<i64: 4, 72>}, {pipeline_mode = #tpu.pipeline_mode<synchronous>, transform_indices = @transform_9, window_bounds = array<i64: 4, 1>}, {transform_indices = @transform_10, window_bounds = array<i64: 1, 4, 256>}]} {
    %0 = tpu.iota {dimensions = array<i32: 1>} : vector<1x256xi32>
    %1 = arith.sitofp %0 : vector<1x256xi32> to vector<1x256xf32>
    %cst = arith.constant 5.000000e-01 : f32
    %2 = vector.broadcast %cst : f32 to vector<1x256xf32>
    %3 = arith.addf %1, %2 : vector<1x256xf32>
    %cst_0 = arith.constant 6.250000e-02 : f32
    %4 = vector.broadcast %cst_0 : f32 to vector<1x256xf32>
    %5 = arith.mulf %3, %4 : vector<1x256xf32>
    %6 = math.floor %5 : vector<1x256xf32>
    %7 = arith.fptosi %6 : vector<1x256xf32> to vector<1x256xi32>
    %c16_i32 = arith.constant 16 : i32
    %8 = vector.broadcast %c16_i32 : i32 to vector<1x256xi32>
    %9 = arith.muli %7, %8 : vector<1x256xi32>
    %10 = arith.subi %0, %9 : vector<1x256xi32>
    %c16_i32_1 = arith.constant 16 : i32
    %11 = vector.broadcast %c16_i32_1 : i32 to vector<1x256xi32>
    %12 = arith.cmpi sge, %0, %11 : vector<1x256xi32>
    %c240_i32 = arith.constant 240 : i32
    %13 = vector.broadcast %c240_i32 : i32 to vector<1x256xi32>
    %14 = arith.cmpi slt, %0, %13 : vector<1x256xi32>
    %c1_i32 = arith.constant 1 : i32
    %15 = vector.broadcast %c1_i32 : i32 to vector<1x256xi32>
    %16 = arith.cmpi sge, %10, %15 : vector<1x256xi32>
    %c15_i32 = arith.constant 15 : i32
    %17 = vector.broadcast %c15_i32 : i32 to vector<1x256xi32>
    %18 = arith.cmpi slt, %10, %17 : vector<1x256xi32>
    %19 = arith.andi %12, %16 : vector<1x256xi1>
    %20 = arith.extui %19 : vector<1x256xi1> to vector<1x256xi32>
    %21 = arith.sitofp %20 : vector<1x256xi32> to vector<1x256xf32>
    %22 = arith.extui %12 : vector<1x256xi1> to vector<1x256xi32>
    %23 = arith.sitofp %22 : vector<1x256xi32> to vector<1x256xf32>
    %24 = arith.andi %12, %18 : vector<1x256xi1>
    %25 = arith.extui %24 : vector<1x256xi1> to vector<1x256xi32>
    %26 = arith.sitofp %25 : vector<1x256xi32> to vector<1x256xf32>
    %27 = arith.extui %16 : vector<1x256xi1> to vector<1x256xi32>
    %28 = arith.sitofp %27 : vector<1x256xi32> to vector<1x256xf32>
    %29 = arith.extui %18 : vector<1x256xi1> to vector<1x256xi32>
    %30 = arith.sitofp %29 : vector<1x256xi32> to vector<1x256xf32>
    %31 = arith.andi %14, %16 : vector<1x256xi1>
    %32 = arith.extui %31 : vector<1x256xi1> to vector<1x256xi32>
    %33 = arith.sitofp %32 : vector<1x256xi32> to vector<1x256xf32>
    %34 = arith.extui %14 : vector<1x256xi1> to vector<1x256xi32>
    %35 = arith.sitofp %34 : vector<1x256xi32> to vector<1x256xf32>
    %36 = arith.andi %14, %18 : vector<1x256xi1>
    %37 = arith.extui %36 : vector<1x256xi1> to vector<1x256xi32>
    %38 = arith.sitofp %37 : vector<1x256xi32> to vector<1x256xf32>
    %c0 = arith.constant 0 : index
    %c0_2 = arith.constant 0 : index
    %c0_3 = arith.constant 0 : index
    %39 = vector.load %arg2[%c0, %c0_2, %c0_3] : memref<1x4x256xf32, #tpu.memory_space<vmem>>, vector<1x4x256xf32>
    %40 = vector.shape_cast %39 : vector<1x4x256xf32> to vector<4x256xf32>
    %c0_4 = arith.constant 0 : index
    %41 = memref.load %arg1[%c0_4] : memref<3xf32, #tpu.memory_space<smem>>
    %c16 = arith.constant 16 : index
    %c0_5 = arith.constant 0 : index
    %42 = vector.load %arg12[%c16, %c0_5] : memref<72x256xf32, #tpu.memory_space<vmem>>, vector<4x256xf32>
    tpu.vector_store %arg12[%c16, %c0_5], %40 {strides = array<i32>} : memref<72x256xf32, #tpu.memory_space<vmem>>, vector<4x256xf32>,
    %c17_i32 = arith.constant 17 : i32
    %43 = tpu.dynamic_rotate %40 by %c17_i32 dim 1 : vector<4x256xf32>, i32 -> vector<4x256xf32>
    %44 = vector.broadcast %21 : vector<1x256xf32> to vector<4x256xf32>
    %45 = arith.mulf %43, %44 : vector<4x256xf32>
    %c0_6 = arith.constant 0 : index
    %c0_7 = arith.constant 0 : index
    %46 = vector.load %arg12[%c0_6, %c0_7] : memref<72x256xf32, #tpu.memory_space<vmem>>, vector<4x256xf32>
    tpu.vector_store %arg12[%c0_6, %c0_7], %45 {strides = array<i32>} : memref<72x256xf32, #tpu.memory_space<vmem>>, vector<4x256xf32>,
    %c16_i32_8 = arith.constant 16 : i32
    %47 = tpu.dynamic_rotate %40 by %c16_i32_8 dim 1 : vector<4x256xf32>, i32 -> vector<4x256xf32>
    %48 = vector.broadcast %23 : vector<1x256xf32> to vector<4x256xf32>
    %49 = arith.mulf %47, %48 : vector<4x256xf32>
    %c4 = arith.constant 4 : index
    %c0_9 = arith.constant 0 : index
    %50 = vector.load %arg12[%c4, %c0_9] : memref<72x256xf32, #tpu.memory_space<vmem>>, vector<4x256xf32>
    tpu.vector_store %arg12[%c4, %c0_9], %49 {strides = array<i32>} : memref<72x256xf32, #tpu.memory_space<vmem>>, vector<4x256xf32>,
    %c15_i32_10 = arith.constant 15 : i32
    %51 = tpu.dynamic_rotate %40 by %c15_i32_10 dim 1 : vector<4x256xf32>, i32 -> vector<4x256xf32>
    %52 = vector.broadcast %26 : vector<1x256xf32> to vector<4x256xf32>
    %53 = arith.mulf %51, %52 : vector<4x256xf32>
    %c8 = arith.constant 8 : index
    %c0_11 = arith.constant 0 : index
    %54 = vector.load %arg12[%c8, %c0_11] : memref<72x256xf32, #tpu.memory_space<vmem>>, vector<4x256xf32>
    tpu.vector_store %arg12[%c8, %c0_11], %53 {strides = array<i32>} : memref<72x256xf32, #tpu.memory_space<vmem>>, vector<4x256xf32>,
    %c1_i32_12 = arith.constant 1 : i32
    %55 = tpu.dynamic_rotate %40 by %c1_i32_12 dim 1 : vector<4x256xf32>, i32 -> vector<4x256xf32>
    %56 = vector.broadcast %28 : vector<1x256xf32> to vector<4x256xf32>
    %57 = arith.mulf %55, %56 : vector<4x256xf32>
    %c12 = arith.constant 12 : index
    %c0_13 = arith.constant 0 : index
    %58 = vector.load %arg12[%c12, %c0_13] : memref<72x256xf32, #tpu.memory_space<vmem>>, vector<4x256xf32>
    tpu.vector_store %arg12[%c12, %c0_13], %57 {strides = array<i32>} : memref<72x256xf32, #tpu.memory_space<vmem>>, vector<4x256xf32>,
    %c255_i32 = arith.constant 255 : i32
    %59 = tpu.dynamic_rotate %40 by %c255_i32 dim 1 : vector<4x256xf32>, i32 -> vector<4x256xf32>
    %60 = vector.broadcast %30 : vector<1x256xf32> to vector<4x256xf32>
    %61 = arith.mulf %59, %60 : vector<4x256xf32>
    %c20 = arith.constant 20 : index
    %c0_14 = arith.constant 0 : index
    %62 = vector.load %arg12[%c20, %c0_14] : memref<72x256xf32, #tpu.memory_space<vmem>>, vector<4x256xf32>
    tpu.vector_store %arg12[%c20, %c0_14], %61 {strides = array<i32>} : memref<72x256xf32, #tpu.memory_space<vmem>>, vector<4x256xf32>,
    %c241_i32 = arith.constant 241 : i32
    %63 = tpu.dynamic_rotate %40 by %c241_i32 dim 1 : vector<4x256xf32>, i32 -> vector<4x256xf32>
    %64 = vector.broadcast %33 : vector<1x256xf32> to vector<4x256xf32>
    %65 = arith.mulf %63, %64 : vector<4x256xf32>
    %c24 = arith.constant 24 : index
    %c0_15 = arith.constant 0 : index
    %66 = vector.load %arg12[%c24, %c0_15] : memref<72x256xf32, #tpu.memory_space<vmem>>, vector<4x256xf32>
    tpu.vector_store %arg12[%c24, %c0_15], %65 {strides = array<i32>} : memref<72x256xf32, #tpu.memory_space<vmem>>, vector<4x256xf32>,
    %c240_i32_16 = arith.constant 240 : i32
    %67 = tpu.dynamic_rotate %40 by %c240_i32_16 dim 1 : vector<4x256xf32>, i32 -> vector<4x256xf32>
    %68 = vector.broadcast %35 : vector<1x256xf32> to vector<4x256xf32>
    %69 = arith.mulf %67, %68 : vector<4x256xf32>
    %c28 = arith.constant 28 : index
    %c0_17 = arith.constant 0 : index
    %70 = vector.load %arg12[%c28, %c0_17] : memref<72x256xf32, #tpu.memory_space<vmem>>, vector<4x256xf32>
    tpu.vector_store %arg12[%c28, %c0_17], %69 {strides = array<i32>} : memref<72x256xf32, #tpu.memory_space<vmem>>, vector<4x256xf32>,
    %c239_i32 = arith.constant 239 : i32
    %71 = tpu.dynamic_rotate %40 by %c239_i32 dim 1 : vector<4x256xf32>, i32 -> vector<4x256xf32>
    %72 = vector.broadcast %38 : vector<1x256xf32> to vector<4x256xf32>
    %73 = arith.mulf %71, %72 : vector<4x256xf32>
    %c32 = arith.constant 32 : index
    %c0_18 = arith.constant 0 : index
    %74 = vector.load %arg12[%c32, %c0_18] : memref<72x256xf32, #tpu.memory_space<vmem>>, vector<4x256xf32>
    tpu.vector_store %arg12[%c32, %c0_18], %73 {strides = array<i32>} : memref<72x256xf32, #tpu.memory_space<vmem>>, vector<4x256xf32>,
    %c0_19 = arith.constant 0 : index
    %c0_20 = arith.constant 0 : index
    %75 = vector.load %arg3[%c0_19, %c0_20] : memref<8x36xf32, #tpu.memory_space<vmem>>, vector<8x36xf32>
    %c0_21 = arith.constant 0 : index
    %c0_22 = arith.constant 0 : index
    %76 = vector.load %arg12[%c0_21, %c0_22] : memref<72x256xf32, #tpu.memory_space<vmem>>, vector<36x256xf32>
    %cst_23 = arith.constant dense<0.000000e+00> : vector<8x256xf32>
    %77 = tpu.matmul %75, %76, %cst_23 {dimension_numbers = #tpu.dot_dimension_numbers<[1], [0], [0], [1], [0, 0, 1, 1], [], []>} : vector<8x36xf32>, vector<36x256xf32>, vector<8x256xf32> -> vector<8x256xf32>
    %c0_24 = arith.constant 0 : index
    %c0_25 = arith.constant 0 : index
    %78 = vector.load %arg4[%c0_24, %c0_25] : memref<8x1xf32, #tpu.memory_space<vmem>>, vector<8x1xf32>
    %79 = vector.broadcast %78 : vector<8x1xf32> to vector<8x256xf32>
    %80 = arith.addf %77, %79 : vector<8x256xf32>
    %cst_26 = arith.constant 0.000000e+00 : f32
    %81 = vector.broadcast %cst_26 : f32 to vector<8x256xf32>
    %82 = arith.cmpf ogt, %80, %81 : vector<8x256xf32>
    %83 = vector.broadcast %41 : f32 to vector<8x256xf32>
    %84 = arith.mulf %83, %80 : vector<8x256xf32>
    %85 = arith.select %82, %80, %84 : vector<8x256xi1>, vector<8x256xf32>
    %c1 = arith.constant 1 : index
    %86 = memref.load %arg1[%c1] : memref<3xf32, #tpu.memory_space<smem>>
    %c32_27 = arith.constant 32 : index
    %c0_28 = arith.constant 0 : index
    %87 = vector.load %arg12[%c32_27, %c0_28] : memref<72x256xf32, #tpu.memory_space<vmem>>, vector<8x256xf32>
    tpu.vector_store %arg12[%c32_27, %c0_28], %85 {strides = array<i32>} : memref<72x256xf32, #tpu.memory_space<vmem>>, vector<8x256xf32>,
    %c17_i32_29 = arith.constant 17 : i32
    %88 = tpu.dynamic_rotate %85 by %c17_i32_29 dim 1 : vector<8x256xf32>, i32 -> vector<8x256xf32>
    %89 = vector.broadcast %21 : vector<1x256xf32> to vector<8x256xf32>
    %90 = arith.mulf %88, %89 : vector<8x256xf32>
    %c0_30 = arith.constant 0 : index
    %c0_31 = arith.constant 0 : index
    %91 = vector.load %arg12[%c0_30, %c0_31] : memref<72x256xf32, #tpu.memory_space<vmem>>, vector<8x256xf32>
    tpu.vector_store %arg12[%c0_30, %c0_31], %90 {strides = array<i32>} : memref<72x256xf32, #tpu.memory_space<vmem>>, vector<8x256xf32>,
    %c16_i32_32 = arith.constant 16 : i32
    %92 = tpu.dynamic_rotate %85 by %c16_i32_32 dim 1 : vector<8x256xf32>, i32 -> vector<8x256xf32>
    %93 = vector.broadcast %23 : vector<1x256xf32> to vector<8x256xf32>
    %94 = arith.mulf %92, %93 : vector<8x256xf32>
    %c8_33 = arith.constant 8 : index
    %c0_34 = arith.constant 0 : index
    %95 = vector.load %arg12[%c8_33, %c0_34] : memref<72x256xf32, #tpu.memory_space<vmem>>, vector<8x256xf32>
    tpu.vector_store %arg12[%c8_33, %c0_34], %94 {strides = array<i32>} : memref<72x256xf32, #tpu.memory_space<vmem>>, vector<8x256xf32>,
    %c15_i32_35 = arith.constant 15 : i32
    %96 = tpu.dynamic_rotate %85 by %c15_i32_35 dim 1 : vector<8x256xf32>, i32 -> vector<8x256xf32>
    %97 = vector.broadcast %26 : vector<1x256xf32> to vector<8x256xf32>
    %98 = arith.mulf %96, %97 : vector<8x256xf32>
    %c16_36 = arith.constant 16 : index
    %c0_37 = arith.constant 0 : index
    %99 = vector.load %arg12[%c16_36, %c0_37] : memref<72x256xf32, #tpu.memory_space<vmem>>, vector<8x256xf32>
    tpu.vector_store %arg12[%c16_36, %c0_37], %98 {strides = array<i32>} : memref<72x256xf32, #tpu.memory_space<vmem>>, vector<8x256xf32>,
    %c1_i32_38 = arith.constant 1 : i32
    %100 = tpu.dynamic_rotate %85 by %c1_i32_38 dim 1 : vector<8x256xf32>, i32 -> vector<8x256xf32>
    %101 = vector.broadcast %28 : vector<1x256xf32> to vector<8x256xf32>
    %102 = arith.mulf %100, %101 : vector<8x256xf32>
    %c24_39 = arith.constant 24 : index
    %c0_40 = arith.constant 0 : index
    %103 = vector.load %arg12[%c24_39, %c0_40] : memref<72x256xf32, #tpu.memory_space<vmem>>, vector<8x256xf32>
    tpu.vector_store %arg12[%c24_39, %c0_40], %102 {strides = array<i32>} : memref<72x256xf32, #tpu.memory_space<vmem>>, vector<8x256xf32>,
    %c255_i32_41 = arith.constant 255 : i32
    %104 = tpu.dynamic_rotate %85 by %c255_i32_41 dim 1 : vector<8x256xf32>, i32 -> vector<8x256xf32>
    %105 = vector.broadcast %30 : vector<1x256xf32> to vector<8x256xf32>
    %106 = arith.mulf %104, %105 : vector<8x256xf32>
    %c40 = arith.constant 40 : index
    %c0_42 = arith.constant 0 : index
    %107 = vector.load %arg12[%c40, %c0_42] : memref<72x256xf32, #tpu.memory_space<vmem>>, vector<8x256xf32>
    tpu.vector_store %arg12[%c40, %c0_42], %106 {strides = array<i32>} : memref<72x256xf32, #tpu.memory_space<vmem>>, vector<8x256xf32>,
    %c241_i32_43 = arith.constant 241 : i32
    %108 = tpu.dynamic_rotate %85 by %c241_i32_43 dim 1 : vector<8x256xf32>, i32 -> vector<8x256xf32>
    %109 = vector.broadcast %33 : vector<1x256xf32> to vector<8x256xf32>
    %110 = arith.mulf %108, %109 : vector<8x256xf32>
    %c48 = arith.constant 48 : index
    %c0_44 = arith.constant 0 : index
    %111 = vector.load %arg12[%c48, %c0_44] : memref<72x256xf32, #tpu.memory_space<vmem>>, vector<8x256xf32>
    tpu.vector_store %arg12[%c48, %c0_44], %110 {strides = array<i32>} : memref<72x256xf32, #tpu.memory_space<vmem>>, vector<8x256xf32>,
    %c240_i32_45 = arith.constant 240 : i32
    %112 = tpu.dynamic_rotate %85 by %c240_i32_45 dim 1 : vector<8x256xf32>, i32 -> vector<8x256xf32>
    %113 = vector.broadcast %35 : vector<1x256xf32> to vector<8x256xf32>
    %114 = arith.mulf %112, %113 : vector<8x256xf32>
    %c56 = arith.constant 56 : index
    %c0_46 = arith.constant 0 : index
    %115 = vector.load %arg12[%c56, %c0_46] : memref<72x256xf32, #tpu.memory_space<vmem>>, vector<8x256xf32>
    tpu.vector_store %arg12[%c56, %c0_46], %114 {strides = array<i32>} : memref<72x256xf32, #tpu.memory_space<vmem>>, vector<8x256xf32>,
    %c239_i32_47 = arith.constant 239 : i32
    %116 = tpu.dynamic_rotate %85 by %c239_i32_47 dim 1 : vector<8x256xf32>, i32 -> vector<8x256xf32>
    %117 = vector.broadcast %38 : vector<1x256xf32> to vector<8x256xf32>
    %118 = arith.mulf %116, %117 : vector<8x256xf32>
    %c64 = arith.constant 64 : index
    %c0_48 = arith.constant 0 : index
    %119 = vector.load %arg12[%c64, %c0_48] : memref<72x256xf32, #tpu.memory_space<vmem>>, vector<8x256xf32>
    tpu.vector_store %arg12[%c64, %c0_48], %118 {strides = array<i32>} : memref<72x256xf32, #tpu.memory_space<vmem>>, vector<8x256xf32>,
    %c0_49 = arith.constant 0 : index
    %c0_50 = arith.constant 0 : index
    %120 = vector.load %arg5[%c0_49, %c0_50] : memref<8x72xf32, #tpu.memory_space<vmem>>, vector<8x72xf32>
    %c0_51 = arith.constant 0 : index
    %c0_52 = arith.constant 0 : index
    %121 = vector.load %arg12[%c0_51, %c0_52] : memref<72x256xf32, #tpu.memory_space<vmem>>, vector<72x256xf32>
    %cst_53 = arith.constant dense<0.000000e+00> : vector<8x256xf32>
    %122 = tpu.matmul %120, %121, %cst_53 {dimension_numbers = #tpu.dot_dimension_numbers<[1], [0], [0], [1], [0, 0, 1, 1], [], []>} : vector<8x72xf32>, vector<72x256xf32>, vector<8x256xf32> -> vector<8x256xf32>
    %c0_54 = arith.constant 0 : index
    %c0_55 = arith.constant 0 : index
    %123 = vector.load %arg6[%c0_54, %c0_55] : memref<8x1xf32, #tpu.memory_space<vmem>>, vector<8x1xf32>
    %124 = vector.broadcast %123 : vector<8x1xf32> to vector<8x256xf32>
    %125 = arith.addf %122, %124 : vector<8x256xf32>
    %cst_56 = arith.constant 0.000000e+00 : f32
    %126 = vector.broadcast %cst_56 : f32 to vector<8x256xf32>
    %127 = arith.cmpf ogt, %125, %126 : vector<8x256xf32>
    %128 = vector.broadcast %86 : f32 to vector<8x256xf32>
    %129 = arith.mulf %128, %125 : vector<8x256xf32>
    %130 = arith.select %127, %125, %129 : vector<8x256xi1>, vector<8x256xf32>
    %c2 = arith.constant 2 : index
    %131 = memref.load %arg1[%c2] : memref<3xf32, #tpu.memory_space<smem>>
    %c32_57 = arith.constant 32 : index
    %c0_58 = arith.constant 0 : index
    %132 = vector.load %arg12[%c32_57, %c0_58] : memref<72x256xf32, #tpu.memory_space<vmem>>, vector<8x256xf32>
    tpu.vector_store %arg12[%c32_57, %c0_58], %130 {strides = array<i32>} : memref<72x256xf32, #tpu.memory_space<vmem>>, vector<8x256xf32>,
    %c17_i32_59 = arith.constant 17 : i32
    %133 = tpu.dynamic_rotate %130 by %c17_i32_59 dim 1 : vector<8x256xf32>, i32 -> vector<8x256xf32>
    %134 = vector.broadcast %21 : vector<1x256xf32> to vector<8x256xf32>
    %135 = arith.mulf %133, %134 : vector<8x256xf32>
    %c0_60 = arith.constant 0 : index
    %c0_61 = arith.constant 0 : index
    %136 = vector.load %arg12[%c0_60, %c0_61] : memref<72x256xf32, #tpu.memory_space<vmem>>, vector<8x256xf32>
    tpu.vector_store %arg12[%c0_60, %c0_61], %135 {strides = array<i32>} : memref<72x256xf32, #tpu.memory_space<vmem>>, vector<8x256xf32>,
    %c16_i32_62 = arith.constant 16 : i32
    %137 = tpu.dynamic_rotate %130 by %c16_i32_62 dim 1 : vector<8x256xf32>, i32 -> vector<8x256xf32>
    %138 = vector.broadcast %23 : vector<1x256xf32> to vector<8x256xf32>
    %139 = arith.mulf %137, %138 : vector<8x256xf32>
    %c8_63 = arith.constant 8 : index
    %c0_64 = arith.constant 0 : index
    %140 = vector.load %arg12[%c8_63, %c0_64] : memref<72x256xf32, #tpu.memory_space<vmem>>, vector<8x256xf32>
    tpu.vector_store %arg12[%c8_63, %c0_64], %139 {strides = array<i32>} : memref<72x256xf32, #tpu.memory_space<vmem>>, vector<8x256xf32>,
    %c15_i32_65 = arith.constant 15 : i32
    %141 = tpu.dynamic_rotate %130 by %c15_i32_65 dim 1 : vector<8x256xf32>, i32 -> vector<8x256xf32>
    %142 = vector.broadcast %26 : vector<1x256xf32> to vector<8x256xf32>
    %143 = arith.mulf %141, %142 : vector<8x256xf32>
    %c16_66 = arith.constant 16 : index
    %c0_67 = arith.constant 0 : index
    %144 = vector.load %arg12[%c16_66, %c0_67] : memref<72x256xf32, #tpu.memory_space<vmem>>, vector<8x256xf32>
    tpu.vector_store %arg12[%c16_66, %c0_67], %143 {strides = array<i32>} : memref<72x256xf32, #tpu.memory_space<vmem>>, vector<8x256xf32>,
    %c1_i32_68 = arith.constant 1 : i32
    %145 = tpu.dynamic_rotate %130 by %c1_i32_68 dim 1 : vector<8x256xf32>, i32 -> vector<8x256xf32>
    %146 = vector.broadcast %28 : vector<1x256xf32> to vector<8x256xf32>
    %147 = arith.mulf %145, %146 : vector<8x256xf32>
    %c24_69 = arith.constant 24 : index
    %c0_70 = arith.constant 0 : index
    %148 = vector.load %arg12[%c24_69, %c0_70] : memref<72x256xf32, #tpu.memory_space<vmem>>, vector<8x256xf32>
    tpu.vector_store %arg12[%c24_69, %c0_70], %147 {strides = array<i32>} : memref<72x256xf32, #tpu.memory_space<vmem>>, vector<8x256xf32>,
    %c255_i32_71 = arith.constant 255 : i32
    %149 = tpu.dynamic_rotate %130 by %c255_i32_71 dim 1 : vector<8x256xf32>, i32 -> vector<8x256xf32>
    %150 = vector.broadcast %30 : vector<1x256xf32> to vector<8x256xf32>
    %151 = arith.mulf %149, %150 : vector<8x256xf32>
    %c40_72 = arith.constant 40 : index
    %c0_73 = arith.constant 0 : index
    %152 = vector.load %arg12[%c40_72, %c0_73] : memref<72x256xf32, #tpu.memory_space<vmem>>, vector<8x256xf32>
    tpu.vector_store %arg12[%c40_72, %c0_73], %151 {strides = array<i32>} : memref<72x256xf32, #tpu.memory_space<vmem>>, vector<8x256xf32>,
    %c241_i32_74 = arith.constant 241 : i32
    %153 = tpu.dynamic_rotate %130 by %c241_i32_74 dim 1 : vector<8x256xf32>, i32 -> vector<8x256xf32>
    %154 = vector.broadcast %33 : vector<1x256xf32> to vector<8x256xf32>
    %155 = arith.mulf %153, %154 : vector<8x256xf32>
    %c48_75 = arith.constant 48 : index
    %c0_76 = arith.constant 0 : index
    %156 = vector.load %arg12[%c48_75, %c0_76] : memref<72x256xf32, #tpu.memory_space<vmem>>, vector<8x256xf32>
    tpu.vector_store %arg12[%c48_75, %c0_76], %155 {strides = array<i32>} : memref<72x256xf32, #tpu.memory_space<vmem>>, vector<8x256xf32>,
    %c240_i32_77 = arith.constant 240 : i32
    %157 = tpu.dynamic_rotate %130 by %c240_i32_77 dim 1 : vector<8x256xf32>, i32 -> vector<8x256xf32>
    %158 = vector.broadcast %35 : vector<1x256xf32> to vector<8x256xf32>
    %159 = arith.mulf %157, %158 : vector<8x256xf32>
    %c56_78 = arith.constant 56 : index
    %c0_79 = arith.constant 0 : index
    %160 = vector.load %arg12[%c56_78, %c0_79] : memref<72x256xf32, #tpu.memory_space<vmem>>, vector<8x256xf32>
    tpu.vector_store %arg12[%c56_78, %c0_79], %159 {strides = array<i32>} : memref<72x256xf32, #tpu.memory_space<vmem>>, vector<8x256xf32>,
    %c239_i32_80 = arith.constant 239 : i32
    %161 = tpu.dynamic_rotate %130 by %c239_i32_80 dim 1 : vector<8x256xf32>, i32 -> vector<8x256xf32>
    %162 = vector.broadcast %38 : vector<1x256xf32> to vector<8x256xf32>
    %163 = arith.mulf %161, %162 : vector<8x256xf32>
    %c64_81 = arith.constant 64 : index
    %c0_82 = arith.constant 0 : index
    %164 = vector.load %arg12[%c64_81, %c0_82] : memref<72x256xf32, #tpu.memory_space<vmem>>, vector<8x256xf32>
    tpu.vector_store %arg12[%c64_81, %c0_82], %163 {strides = array<i32>} : memref<72x256xf32, #tpu.memory_space<vmem>>, vector<8x256xf32>,
    %c0_83 = arith.constant 0 : index
    %c0_84 = arith.constant 0 : index
    %165 = vector.load %arg7[%c0_83, %c0_84] : memref<8x72xf32, #tpu.memory_space<vmem>>, vector<8x72xf32>
    %c0_85 = arith.constant 0 : index
    %c0_86 = arith.constant 0 : index
    %166 = vector.load %arg12[%c0_85, %c0_86] : memref<72x256xf32, #tpu.memory_space<vmem>>, vector<72x256xf32>
    %cst_87 = arith.constant dense<0.000000e+00> : vector<8x256xf32>
    %167 = tpu.matmul %165, %166, %cst_87 {dimension_numbers = #tpu.dot_dimension_numbers<[1], [0], [0], [1], [0, 0, 1, 1], [], []>} : vector<8x72xf32>, vector<72x256xf32>, vector<8x256xf32> -> vector<8x256xf32>
    %c0_88 = arith.constant 0 : index
    %c0_89 = arith.constant 0 : index
    %168 = vector.load %arg8[%c0_88, %c0_89] : memref<8x1xf32, #tpu.memory_space<vmem>>, vector<8x1xf32>
    %169 = vector.broadcast %168 : vector<8x1xf32> to vector<8x256xf32>
    %170 = arith.addf %167, %169 : vector<8x256xf32>
    %cst_90 = arith.constant 0.000000e+00 : f32
    %171 = vector.broadcast %cst_90 : f32 to vector<8x256xf32>
    %172 = arith.cmpf ogt, %170, %171 : vector<8x256xf32>
    %173 = vector.broadcast %131 : f32 to vector<8x256xf32>
    %174 = arith.mulf %173, %170 : vector<8x256xf32>
    %175 = arith.select %172, %170, %174 : vector<8x256xi1>, vector<8x256xf32>
    %c32_91 = arith.constant 32 : index
    %c0_92 = arith.constant 0 : index
    %176 = vector.load %arg12[%c32_91, %c0_92] : memref<72x256xf32, #tpu.memory_space<vmem>>, vector<8x256xf32>
    tpu.vector_store %arg12[%c32_91, %c0_92], %175 {strides = array<i32>} : memref<72x256xf32, #tpu.memory_space<vmem>>, vector<8x256xf32>,
    %c17_i32_93 = arith.constant 17 : i32
    %177 = tpu.dynamic_rotate %175 by %c17_i32_93 dim 1 : vector<8x256xf32>, i32 -> vector<8x256xf32>
    %178 = vector.broadcast %21 : vector<1x256xf32> to vector<8x256xf32>
    %179 = arith.mulf %177, %178 : vector<8x256xf32>
    %c0_94 = arith.constant 0 : index
    %c0_95 = arith.constant 0 : index
    %180 = vector.load %arg12[%c0_94, %c0_95] : memref<72x256xf32, #tpu.memory_space<vmem>>, vector<8x256xf32>
    tpu.vector_store %arg12[%c0_94, %c0_95], %179 {strides = array<i32>} : memref<72x256xf32, #tpu.memory_space<vmem>>, vector<8x256xf32>,
    %c16_i32_96 = arith.constant 16 : i32
    %181 = tpu.dynamic_rotate %175 by %c16_i32_96 dim 1 : vector<8x256xf32>, i32 -> vector<8x256xf32>
    %182 = vector.broadcast %23 : vector<1x256xf32> to vector<8x256xf32>
    %183 = arith.mulf %181, %182 : vector<8x256xf32>
    %c8_97 = arith.constant 8 : index
    %c0_98 = arith.constant 0 : index
    %184 = vector.load %arg12[%c8_97, %c0_98] : memref<72x256xf32, #tpu.memory_space<vmem>>, vector<8x256xf32>
    tpu.vector_store %arg12[%c8_97, %c0_98], %183 {strides = array<i32>} : memref<72x256xf32, #tpu.memory_space<vmem>>, vector<8x256xf32>,
    %c15_i32_99 = arith.constant 15 : i32
    %185 = tpu.dynamic_rotate %175 by %c15_i32_99 dim 1 : vector<8x256xf32>, i32 -> vector<8x256xf32>
    %186 = vector.broadcast %26 : vector<1x256xf32> to vector<8x256xf32>
    %187 = arith.mulf %185, %186 : vector<8x256xf32>
    %c16_100 = arith.constant 16 : index
    %c0_101 = arith.constant 0 : index
    %188 = vector.load %arg12[%c16_100, %c0_101] : memref<72x256xf32, #tpu.memory_space<vmem>>, vector<8x256xf32>
    tpu.vector_store %arg12[%c16_100, %c0_101], %187 {strides = array<i32>} : memref<72x256xf32, #tpu.memory_space<vmem>>, vector<8x256xf32>,
    %c1_i32_102 = arith.constant 1 : i32
    %189 = tpu.dynamic_rotate %175 by %c1_i32_102 dim 1 : vector<8x256xf32>, i32 -> vector<8x256xf32>
    %190 = vector.broadcast %28 : vector<1x256xf32> to vector<8x256xf32>
    %191 = arith.mulf %189, %190 : vector<8x256xf32>
    %c24_103 = arith.constant 24 : index
    %c0_104 = arith.constant 0 : index
    %192 = vector.load %arg12[%c24_103, %c0_104] : memref<72x256xf32, #tpu.memory_space<vmem>>, vector<8x256xf32>
    tpu.vector_store %arg12[%c24_103, %c0_104], %191 {strides = array<i32>} : memref<72x256xf32, #tpu.memory_space<vmem>>, vector<8x256xf32>,
    %c255_i32_105 = arith.constant 255 : i32
    %193 = tpu.dynamic_rotate %175 by %c255_i32_105 dim 1 : vector<8x256xf32>, i32 -> vector<8x256xf32>
    %194 = vector.broadcast %30 : vector<1x256xf32> to vector<8x256xf32>
    %195 = arith.mulf %193, %194 : vector<8x256xf32>
    %c40_106 = arith.constant 40 : index
    %c0_107 = arith.constant 0 : index
    %196 = vector.load %arg12[%c40_106, %c0_107] : memref<72x256xf32, #tpu.memory_space<vmem>>, vector<8x256xf32>
    tpu.vector_store %arg12[%c40_106, %c0_107], %195 {strides = array<i32>} : memref<72x256xf32, #tpu.memory_space<vmem>>, vector<8x256xf32>,
    %c241_i32_108 = arith.constant 241 : i32
    %197 = tpu.dynamic_rotate %175 by %c241_i32_108 dim 1 : vector<8x256xf32>, i32 -> vector<8x256xf32>
    %198 = vector.broadcast %33 : vector<1x256xf32> to vector<8x256xf32>
    %199 = arith.mulf %197, %198 : vector<8x256xf32>
    %c48_109 = arith.constant 48 : index
    %c0_110 = arith.constant 0 : index
    %200 = vector.load %arg12[%c48_109, %c0_110] : memref<72x256xf32, #tpu.memory_space<vmem>>, vector<8x256xf32>
    tpu.vector_store %arg12[%c48_109, %c0_110], %199 {strides = array<i32>} : memref<72x256xf32, #tpu.memory_space<vmem>>, vector<8x256xf32>,
    %c240_i32_111 = arith.constant 240 : i32
    %201 = tpu.dynamic_rotate %175 by %c240_i32_111 dim 1 : vector<8x256xf32>, i32 -> vector<8x256xf32>
    %202 = vector.broadcast %35 : vector<1x256xf32> to vector<8x256xf32>
    %203 = arith.mulf %201, %202 : vector<8x256xf32>
    %c56_112 = arith.constant 56 : index
    %c0_113 = arith.constant 0 : index
    %204 = vector.load %arg12[%c56_112, %c0_113] : memref<72x256xf32, #tpu.memory_space<vmem>>, vector<8x256xf32>
    tpu.vector_store %arg12[%c56_112, %c0_113], %203 {strides = array<i32>} : memref<72x256xf32, #tpu.memory_space<vmem>>, vector<8x256xf32>,
    %c239_i32_114 = arith.constant 239 : i32
    %205 = tpu.dynamic_rotate %175 by %c239_i32_114 dim 1 : vector<8x256xf32>, i32 -> vector<8x256xf32>
    %206 = vector.broadcast %38 : vector<1x256xf32> to vector<8x256xf32>
    %207 = arith.mulf %205, %206 : vector<8x256xf32>
    %c64_115 = arith.constant 64 : index
    %c0_116 = arith.constant 0 : index
    %208 = vector.load %arg12[%c64_115, %c0_116] : memref<72x256xf32, #tpu.memory_space<vmem>>, vector<8x256xf32>
    tpu.vector_store %arg12[%c64_115, %c0_116], %207 {strides = array<i32>} : memref<72x256xf32, #tpu.memory_space<vmem>>, vector<8x256xf32>,
    %c0_117 = arith.constant 0 : index
    %c0_118 = arith.constant 0 : index
    %209 = vector.load %arg9[%c0_117, %c0_118] : memref<4x72xf32, #tpu.memory_space<vmem>>, vector<4x72xf32>
    %c0_119 = arith.constant 0 : index
    %c0_120 = arith.constant 0 : index
    %210 = vector.load %arg12[%c0_119, %c0_120] : memref<72x256xf32, #tpu.memory_space<vmem>>, vector<72x256xf32>
    %cst_121 = arith.constant dense<0.000000e+00> : vector<4x256xf32>
    %211 = tpu.matmul %209, %210, %cst_121 {dimension_numbers = #tpu.dot_dimension_numbers<[1], [0], [0], [1], [0, 0, 1, 1], [], []>} : vector<4x72xf32>, vector<72x256xf32>, vector<4x256xf32> -> vector<4x256xf32>
    %c0_122 = arith.constant 0 : index
    %c0_123 = arith.constant 0 : index
    %212 = vector.load %arg10[%c0_122, %c0_123] : memref<4x1xf32, #tpu.memory_space<vmem>>, vector<4x1xf32>
    %213 = vector.broadcast %212 : vector<4x1xf32> to vector<4x256xf32>
    %214 = arith.addf %211, %213 : vector<4x256xf32>
    %c0_124 = arith.constant 0 : index
    %c0_125 = arith.constant 0 : index
    %c0_126 = arith.constant 0 : index
    %215 = vector.load %arg2[%c0_124, %c0_125, %c0_126] : memref<1x4x256xf32, #tpu.memory_space<vmem>>, vector<1x4x256xf32>
    %216 = vector.shape_cast %215 : vector<1x4x256xf32> to vector<4x256xf32>
    %217 = arith.addf %214, %216 : vector<4x256xf32>
    %c0_127 = arith.constant 0 : index
    %c0_128 = arith.constant 0 : index
    %c0_129 = arith.constant 0 : index
    %218 = vector.load %arg11[%c0_127, %c0_128, %c0_129] : memref<1x4x256xf32, #tpu.memory_space<vmem>>, vector<1x4x256xf32>
    %219 = vector.shape_cast %218 : vector<1x4x256xf32> to vector<4x256xf32>
    %220 = vector.shape_cast %217 : vector<4x256xf32> to vector<1x4x256xf32>
    tpu.vector_store %arg11[%c0_127, %c0_128, %c0_129], %220 {strides = array<i32>} : memref<1x4x256xf32, #tpu.memory_space<vmem>>, vector<1x4x256xf32>,
    return
  }
  func.func @transform_0(%arg0: i32) -> i32 {
    %c0_i32 = arith.constant 0 : i32
    %c0_i32_0 = arith.constant 0 : i32
    return %c0_i32 : i32
  }
  func.func @transform_1(%arg0: i32) -> (i32, i32, i32) {
    %c0_i32 = arith.constant 0 : i32
    %c0_i32_0 = arith.constant 0 : i32
    %c0_i32_1 = arith.constant 0 : i32
    return %arg0, %c0_i32, %c0_i32_0 : i32, i32, i32
  }
  func.func @transform_2(%arg0: i32) -> (i32, i32) {
    %c0_i32 = arith.constant 0 : i32
    %c0_i32_0 = arith.constant 0 : i32
    %c0_i32_1 = arith.constant 0 : i32
    return %c0_i32, %c0_i32_0 : i32, i32
  }
  func.func @transform_3(%arg0: i32) -> (i32, i32) {
    %c0_i32 = arith.constant 0 : i32
    %c0_i32_0 = arith.constant 0 : i32
    %c0_i32_1 = arith.constant 0 : i32
    return %c0_i32, %c0_i32_0 : i32, i32
  }
  func.func @transform_4(%arg0: i32) -> (i32, i32) {
    %c0_i32 = arith.constant 0 : i32
    %c0_i32_0 = arith.constant 0 : i32
    %c0_i32_1 = arith.constant 0 : i32
    return %c0_i32, %c0_i32_0 : i32, i32
  }
  func.func @transform_5(%arg0: i32) -> (i32, i32) {
    %c0_i32 = arith.constant 0 : i32
    %c0_i32_0 = arith.constant 0 : i32
    %c0_i32_1 = arith.constant 0 : i32
    return %c0_i32, %c0_i32_0 : i32, i32
  }
  func.func @transform_6(%arg0: i32) -> (i32, i32) {
    %c0_i32 = arith.constant 0 : i32
    %c0_i32_0 = arith.constant 0 : i32
    %c0_i32_1 = arith.constant 0 : i32
    return %c0_i32, %c0_i32_0 : i32, i32
  }
  func.func @transform_7(%arg0: i32) -> (i32, i32) {
    %c0_i32 = arith.constant 0 : i32
    %c0_i32_0 = arith.constant 0 : i32
    %c0_i32_1 = arith.constant 0 : i32
    return %c0_i32, %c0_i32_0 : i32, i32
  }
  func.func @transform_8(%arg0: i32) -> (i32, i32) {
    %c0_i32 = arith.constant 0 : i32
    %c0_i32_0 = arith.constant 0 : i32
    %c0_i32_1 = arith.constant 0 : i32
    return %c0_i32, %c0_i32_0 : i32, i32
  }
  func.func @transform_9(%arg0: i32) -> (i32, i32) {
    %c0_i32 = arith.constant 0 : i32
    %c0_i32_0 = arith.constant 0 : i32
    %c0_i32_1 = arith.constant 0 : i32
    return %c0_i32, %c0_i32_0 : i32, i32
  }
  func.func @transform_10(%arg0: i32) -> (i32, i32, i32) {
    %c0_i32 = arith.constant 0 : i32
    %c0_i32_0 = arith.constant 0 : i32
    %c0_i32_1 = arith.constant 0 : i32
    return %arg0, %c0_i32, %c0_i32_0 : i32, i32, i32
  }
}

</mosaic_0001>

<llo_original>
// kernel: a_call__.1
$region0: #{a_call__.1}
  #allocation0 [shape = 'u32[]', space=smem, size = 0x4, offset = 0x4, fixed_abs, tag = 'smem constant byte address 0x4 - core index']
  #allocation1 [shape = 'u32[144,128]{1,0:T(1,128)}', space=vmem, size = 0x12000, scoped, tag = 'internal scratch']
  #allocation2 [shape = 'f32[72,256]{1,0:T(8,128)}', space=vmem, size = 0x12000, scoped, tag = 'scratch operand']
  %s0 = inlined_call_operand.vmem [shape: f32[3], index: 0, kind: input, shape index: {}]
  %s1 = inlined_call_operand.vmem [shape: f32[2,4,256], index: 1, kind: input, shape index: {}]
  %s2 = inlined_call_operand.vmem [shape: f32[8,36], index: 2, kind: input, shape index: {}]
  %s3 = inlined_call_operand.vmem [shape: f32[8,1], index: 3, kind: input, shape index: {}]
  %s4 = inlined_call_operand.vmem [shape: f32[8,72], index: 4, kind: input, shape index: {}]
  %s5 = inlined_call_operand.vmem [shape: f32[8,1], index: 5, kind: input, shape index: {}]
  %s6 = inlined_call_operand.vmem [shape: f32[8,72], index: 6, kind: input, shape index: {}]
  %s7 = inlined_call_operand.vmem [shape: f32[8,1], index: 7, kind: input, shape index: {}]
  %s8 = inlined_call_operand.vmem [shape: f32[4,72], index: 8, kind: input, shape index: {}]
  %s9 = inlined_call_operand.vmem [shape: f32[4,1], index: 9, kind: input, shape index: {}]
  %s10 = inlined_call_operand.vmem [shape: f32[2,4,256], index: 10, kind: output, shape index: {}]
  %s11 = sld [smem:[#allocation0]]
  $region77: #{a_call__.1} parent=0
    _
  %s13 = ssub.s32 1, %s11
  %s14 = scalar_select 0, %s13, %s11
  $region1: #{a_call__.1} parent=0
    #allocation3 [shape = 'u8[512]{0}', space=smem, size = 0x200, scoped, tag = 'input window, operand 0, single buffered']
    #allocation4 [shape = 's32[2]{0}', space=sflag, size = 0x8, scoped, tag = 'scoped memory for a_call__.1']
    %15 = vsyncpa [#allocation4], 0
    loop: start=0, step=1, limit=4
    $region2: #{a_call__.1} parent=1 // loop_pre_header
      _
    $region3: #{a_call__.1} parent=1 // loop_header
      %s17 = sphi 0, %s21
      %p18 = scmp.ge.s32.totalorder %s17, 4
      %s25 = sphi 0, %s25
      %s27 = sphi 0, %s25
      %s28 = sphi 0, %s27
      %s42 = sphi 0, %s28
      %s48 = sphi 0, %s50
      %s51 = sphi 0, %s48
      %s52 = sphi 0, %s51
      %s68 = sphi 0, %s52
      %s72 = sphi 0, %s72
      %s74 = sphi 0, %s72
      %s75 = sphi 0, %s74
      %s89 = sphi 0, %s75
      %s93 = sphi 0, %s93
      %s95 = sphi 0, %s93
      %s96 = sphi 0, %s95
      %s110 = sphi 0, %s96
      %s114 = sphi 0, %s114
      %s116 = sphi 0, %s114
      %s117 = sphi 0, %s116
      %s131 = sphi 0, %s117
      %s135 = sphi 0, %s135
      %s137 = sphi 0, %s135
      %s138 = sphi 0, %s137
      %s152 = sphi 0, %s138
      %s156 = sphi 0, %s156
      %s158 = sphi 0, %s156
      %s159 = sphi 0, %s158
      %s173 = sphi 0, %s159
      %s177 = sphi 0, %s177
      %s179 = sphi 0, %s177
      %s180 = sphi 0, %s179
      %s194 = sphi 0, %s180
      %s198 = sphi 0, %s198
      %s200 = sphi 0, %s198
      %s201 = sphi 0, %s200
      %s215 = sphi 0, %s201
      %s219 = sphi 0, %s219
      %s221 = sphi 0, %s219
      %s222 = sphi 0, %s221
      %s236 = sphi 0, %s222
      %s242 = sphi 0, %s244
      %s245 = sphi 0, %s242
      %s246 = sphi 0, %s245
      %s262 = sphi 0, %s246
    $region4: #{a_call__.1} parent=1 // loop_header_branch
      %20 = sbr.rel (%p18) target = $region8
    $region5: #{a_call__.1} parent=1 // loop_body
      %s22 = ssub.s32 %s17, 1
      %s23 = ssub.s32 %s17, 2
      %s24 = sadd.s32 %s17, 1
      %s26 = sadd.s32 %s25, 1
      %p29 = scmp.eq.s32.totalorder %s17, 1
      %p30 = scmp.ne.s32.totalorder %s25, %s27
      %p31 = scmp.eq.s32.totalorder %s17, 0
      %p32 = por %p30, %p31
      %p33 = scmp.ne.s32.totalorder %s25, %s27
      %p34 = scmp.eq.s32.totalorder %s22, 1
      %p35 = por %p33, %p34
      %p36 = scmp.ne.s32.totalorder %s27, %s28
      %p37 = scmp.eq.s32.totalorder %s22, 0
      %p38 = por %p36, %p37
      %p39 = scmp.ne.s32.totalorder %s27, %s28
      %p40 = scmp.eq.s32.totalorder %s23, 1
      %p41 = por %p39, %p40
      %p43 = scmp.ne.s32.totalorder %s28, %s42
      %p44 = scmp.eq.s32.totalorder %s23, 0
      %p45 = por %p43, %p44
      %s46 = ssub.s32 %s17, %s24
      %p47 = scmp.eq.s32.totalorder %s46, 0
      %s49 = sadd.s32 %s48, 1
      %s50 = scalar_select %p47, %s48, %s49
      %p53 = pneg %p47
      %p54 = scmp.eq.s32.totalorder %s17, 1
      %p55 = por %p53, %p54
      %p56 = scmp.ne.s32.totalorder %s48, %s51
      %p57 = scmp.eq.s32.totalorder %s17, 0
      %p58 = por %p56, %p57
      %p59 = scmp.ne.s32.totalorder %s48, %s51
      %p60 = scmp.eq.s32.totalorder %s22, 1
      %p61 = por %p59, %p60
      %p62 = scmp.ne.s32.totalorder %s51, %s52
      %p63 = scmp.eq.s32.totalorder %s22, 0
      %p64 = por %p62, %p63
      %p65 = scmp.ne.s32.totalorder %s51, %s52
      %p66 = scmp.eq.s32.totalorder %s23, 1
      %p67 = por %p65, %p66
      %p69 = scmp.ne.s32.totalorder %s52, %s68
      %p70 = scmp.eq.s32.totalorder %s23, 0
      %p71 = por %p69, %p70
      %s73 = sadd.s32 %s72, 1
      %p76 = scmp.eq.s32.totalorder %s17, 1
      %p77 = scmp.ne.s32.totalorder %s72, %s74
      %p78 = scmp.eq.s32.totalorder %s17, 0
      %p79 = por %p77, %p78
      %p80 = scmp.ne.s32.totalorder %s72, %s74
      %p81 = scmp.eq.s32.totalorder %s22, 1
      %p82 = por %p80, %p81
      %p83 = scmp.ne.s32.totalorder %s74, %s75
      %p84 = scmp.eq.s32.totalorder %s22, 0
      %p85 = por %p83, %p84
      %p86 = scmp.ne.s32.totalorder %s74, %s75
      %p87 = scmp.eq.s32.totalorder %s23, 1
      %p88 = por %p86, %p87
      %p90 = scmp.ne.s32.totalorder %s75, %s89
      %p91 = scmp.eq.s32.totalorder %s23, 0
      %p92 = por %p90, %p91
      %s94 = sadd.s32 %s93, 1
      %p97 = scmp.eq.s32.totalorder %s17, 1
      %p98 = scmp.ne.s32.totalorder %s93, %s95
      %p99 = scmp.eq.s32.totalorder %s17, 0
      %p100 = por %p98, %p99
      %p101 = scmp.ne.s32.totalorder %s93, %s95
      %p102 = scmp.eq.s32.totalorder %s22, 1
      %p103 = por %p101, %p102
      %p104 = scmp.ne.s32.totalorder %s95, %s96
      %p105 = scmp.eq.s32.totalorder %s22, 0
      %p106 = por %p104, %p105
      %p107 = scmp.ne.s32.totalorder %s95, %s96
      %p108 = scmp.eq.s32.totalorder %s23, 1
      %p109 = por %p107, %p108
      %p111 = scmp.ne.s32.totalorder %s96, %s110
      %p112 = scmp.eq.s32.totalorder %s23, 0
      %p113 = por %p111, %p112
      %s115 = sadd.s32 %s114, 1
      %p118 = scmp.eq.s32.totalorder %s17, 1
      %p119 = scmp.ne.s32.totalorder %s114, %s116
      %p120 = scmp.eq.s32.totalorder %s17, 0
      %p121 = por %p119, %p120
      %p122 = scmp.ne.s32.totalorder %s114, %s116
      %p123 = scmp.eq.s32.totalorder %s22, 1
      %p124 = por %p122, %p123
      %p125 = scmp.ne.s32.totalorder %s116, %s117
      %p126 = scmp.eq.s32.totalorder %s22, 0
      %p127 = por %p125, %p126
      %p128 = scmp.ne.s32.totalorder %s116, %s117
      %p129 = scmp.eq.s32.totalorder %s23, 1
      %p130 = por %p128, %p129
      %p132 = scmp.ne.s32.totalorder %s117, %s131
      %p133 = scmp.eq.s32.totalorder %s23, 0
      %p134 = por %p132, %p133
      %s136 = sadd.s32 %s135, 1
      %p139 = scmp.eq.s32.totalorder %s17, 1
      %p140 = scmp.ne.s32.totalorder %s135, %s137
      %p141 = scmp.eq.s32.totalorder %s17, 0
      %p142 = por %p140, %p141
      %p143 = scmp.ne.s32.totalorder %s135, %s137
      %p144 = scmp.eq.s32.totalorder %s22, 1
      %p145 = por %p143, %p144
      %p146 = scmp.ne.s32.totalorder %s137, %s138
      %p147 = scmp.eq.s32.totalorder %s22, 0
      %p148 = por %p146, %p147
      %p149 = scmp.ne.s32.totalorder %s137, %s138
      %p150 = scmp.eq.s32.totalorder %s23, 1
      %p151 = por %p149, %p150
      %p153 = scmp.ne.s32.totalorder %s138, %s152
      %p154 = scmp.eq.s32.totalorder %s23, 0
      %p155 = por %p153, %p154
      %s157 = sadd.s32 %s156, 1
      %p160 = scmp.eq.s32.totalorder %s17, 1
      %p161 = scmp.ne.s32.totalorder %s156, %s158
      %p162 = scmp.eq.s32.totalorder %s17, 0
      %p163 = por %p161, %p162
      %p164 = scmp.ne.s32.totalorder %s156, %s158
      %p165 = scmp.eq.s32.totalorder %s22, 1
      %p166 = por %p164, %p165
      %p167 = scmp.ne.s32.totalorder %s158, %s159
      %p168 = scmp.eq.s32.totalorder %s22, 0
      %p169 = por %p167, %p168
      %p170 = scmp.ne.s32.totalorder %s158, %s159
      %p171 = scmp.eq.s32.totalorder %s23, 1
      %p172 = por %p170, %p171
      %p174 = scmp.ne.s32.totalorder %s159, %s173
      %p175 = scmp.eq.s32.totalorder %s23, 0
      %p176 = por %p174, %p175
      %s178 = sadd.s32 %s177, 1
      %p181 = scmp.eq.s32.totalorder %s17, 1
      %p182 = scmp.ne.s32.totalorder %s177, %s179
      %p183 = scmp.eq.s32.totalorder %s17, 0
      %p184 = por %p182, %p183
      %p185 = scmp.ne.s32.totalorder %s177, %s179
      %p186 = scmp.eq.s32.totalorder %s22, 1
      %p187 = por %p185, %p186
      %p188 = scmp.ne.s32.totalorder %s179, %s180
      %p189 = scmp.eq.s32.totalorder %s22, 0
      %p190 = por %p188, %p189
      %p191 = scmp.ne.s32.totalorder %s179, %s180
      %p192 = scmp.eq.s32.totalorder %s23, 1
      %p193 = por %p191, %p192
      %p195 = scmp.ne.s32.totalorder %s180, %s194
      %p196 = scmp.eq.s32.totalorder %s23, 0
      %p197 = por %p195, %p196
      %s199 = sadd.s32 %s198, 1
      %p202 = scmp.eq.s32.totalorder %s17, 1
      %p203 = scmp.ne.s32.totalorder %s198, %s200
      %p204 = scmp.eq.s32.totalorder %s17, 0
      %p205 = por %p203, %p204
      %p206 = scmp.ne.s32.totalorder %s198, %s200
      %p207 = scmp.eq.s32.totalorder %s22, 1
      %p208 = por %p206, %p207
      %p209 = scmp.ne.s32.totalorder %s200, %s201
      %p210 = scmp.eq.s32.totalorder %s22, 0
      %p211 = por %p209, %p210
      %p212 = scmp.ne.s32.totalorder %s200, %s201
      %p213 = scmp.eq.s32.totalorder %s23, 1
      %p214 = por %p212, %p213
      %p216 = scmp.ne.s32.totalorder %s201, %s215
      %p217 = scmp.eq.s32.totalorder %s23, 0
      %p218 = por %p216, %p217
      %s220 = sadd.s32 %s219, 1
      %p223 = scmp.eq.s32.totalorder %s17, 1
      %p224 = scmp.ne.s32.totalorder %s219, %s221
      %p225 = scmp.eq.s32.totalorder %s17, 0
      %p226 = por %p224, %p225
      %p227 = scmp.ne.s32.totalorder %s219, %s221
      %p228 = scmp.eq.s32.totalorder %s22, 1
      %p229 = por %p227, %p228
      %p230 = scmp.ne.s32.totalorder %s221, %s222
      %p231 = scmp.eq.s32.totalorder %s22, 0
      %p232 = por %p230, %p231
      %p233 = scmp.ne.s32.totalorder %s221, %s222
      %p234 = scmp.eq.s32.totalorder %s23, 1
      %p235 = por %p233, %p234
      %p237 = scmp.ne.s32.totalorder %s222, %s236
      %p238 = scmp.eq.s32.totalorder %s23, 0
      %p239 = por %p237, %p238
      %s240 = ssub.s32 %s17, %s24
      %p241 = scmp.eq.s32.totalorder %s240, 0
      %s243 = sadd.s32 %s242, 1
      %s244 = scalar_select %p241, %s242, %s243
      %p247 = pneg %p241
      %p248 = scmp.eq.s32.totalorder %s17, 1
      %p249 = por %p247, %p248
      %p250 = scmp.ne.s32.totalorder %s242, %s245
      %p251 = scmp.eq.s32.totalorder %s17, 0
      %p252 = por %p250, %p251
      %p253 = scmp.ne.s32.totalorder %s242, %s245
      %p254 = scmp.eq.s32.totalorder %s22, 1
      %p255 = por %p253, %p254
      %p256 = scmp.ne.s32.totalorder %s245, %s246
      %p257 = scmp.eq.s32.totalorder %s22, 0
      %p258 = por %p256, %p257
      %p259 = scmp.ne.s32.totalorder %s245, %s246
      %p260 = scmp.eq.s32.totalorder %s23, 1
      %p261 = por %p259, %p260
      %p263 = scmp.ne.s32.totalorder %s246, %s262
      %p264 = scmp.eq.s32.totalorder %s23, 0
      %p265 = por %p263, %p264
      %p266 = scmp.le.s32.totalorder 1, %s17
      %p267 = scmp.lt.s32.totalorder %s17, 3
      %p268 = pnand %p266, %p267
      %p269 = pneg %p268
      // Predicated region
      $region9: #{a_call__.1} parent=5 // pred_check
        _
      $region10: #{a_call__.1} parent=5 // pred_check_branch
        %271 = sbr.rel (%p268) target = $region12
      $region11: #{a_call__.1} parent=5 // pred_region
        %s272 = ssub.s32 %s17, 1
        // Predicated region
        $region13: #{a_call__.1} parent=11 // pred_check
          %p273 = pneg %p38
        $region14: #{a_call__.1} parent=11 // pred_check_branch
          %275 = sbr.rel (%p273) target = $region16
        $region15: #{a_call__.1} parent=11 // pred_region
          %s277 = ssub.s32 16, 16
          %278 = vsyncadd [#allocation4], %s277
          %s280 = sshll.u32 %s0, 4
          %s281 = int_to_ptr.vmem [resolvable:$true] %s280
          %283 = dma.vmem_to_smem %s281, 16, [#allocation3], [#allocation4]
        $region16: #{a_call__.1} parent=11 // pred_fallthru
          _
        // Predicated region
        $region17: #{a_call__.1} parent=11 // pred_check
          %p284 = pneg %p85
        $region18: #{a_call__.1} parent=11 // pred_check_branch
          %286 = sbr.rel (%p284) target = $region20
        $region19: #{a_call__.1} parent=11 // pred_region
          _
        $region20: #{a_call__.1} parent=11 // pred_fallthru
          _
        // Predicated region
        $region21: #{a_call__.1} parent=11 // pred_check
          %p287 = pneg %p106
        $region22: #{a_call__.1} parent=11 // pred_check_branch
          %289 = sbr.rel (%p287) target = $region24
        $region23: #{a_call__.1} parent=11 // pred_region
          _
        $region24: #{a_call__.1} parent=11 // pred_fallthru
          _
        // Predicated region
        $region25: #{a_call__.1} parent=11 // pred_check
          %p290 = pneg %p127
        $region26: #{a_call__.1} parent=11 // pred_check_branch
          %292 = sbr.rel (%p290) target = $region28
        $region27: #{a_call__.1} parent=11 // pred_region
          _
        $region28: #{a_call__.1} parent=11 // pred_fallthru
          _
        // Predicated region
        $region29: #{a_call__.1} parent=11 // pred_check
          %p293 = pneg %p148
        $region30: #{a_call__.1} parent=11 // pred_check_branch
          %295 = sbr.rel (%p293) target = $region32
        $region31: #{a_call__.1} parent=11 // pred_region
          _
        $region32: #{a_call__.1} parent=11 // pred_fallthru
          _
        // Predicated region
        $region33: #{a_call__.1} parent=11 // pred_check
          %p296 = pneg %p169
        $region34: #{a_call__.1} parent=11 // pred_check_branch
          %298 = sbr.rel (%p296) target = $region36
        $region35: #{a_call__.1} parent=11 // pred_region
          _
        $region36: #{a_call__.1} parent=11 // pred_fallthru
          _
        // Predicated region
        $region37: #{a_call__.1} parent=11 // pred_check
          %p299 = pneg %p190
        $region38: #{a_call__.1} parent=11 // pred_check_branch
          %301 = sbr.rel (%p299) target = $region40
        $region39: #{a_call__.1} parent=11 // pred_region
          _
        $region40: #{a_call__.1} parent=11 // pred_fallthru
          _
        // Predicated region
        $region41: #{a_call__.1} parent=11 // pred_check
          %p302 = pneg %p211
        $region42: #{a_call__.1} parent=11 // pred_check_branch
          %304 = sbr.rel (%p302) target = $region44
        $region43: #{a_call__.1} parent=11 // pred_region
          _
        $region44: #{a_call__.1} parent=11 // pred_fallthru
          _
        // Predicated region
        $region45: #{a_call__.1} parent=11 // pred_check
          %p305 = pneg %p232
        $region46: #{a_call__.1} parent=11 // pred_check_branch
          %307 = sbr.rel (%p305) target = $region48
        $region47: #{a_call__.1} parent=11 // pred_region
          _
        $region48: #{a_call__.1} parent=11 // pred_fallthru
          _
      $region12: #{a_call__.1} parent=5 // pred_fallthru
        _
      %p308 = scmp.lt.s32.totalorder %s17, 2
      // Predicated region
      $region49: #{a_call__.1} parent=5 // pred_check
        %p309 = pneg %p308
      $region50: #{a_call__.1} parent=5 // pred_check_branch
        %311 = sbr.rel (%p309) target = $region52
      $region51: #{a_call__.1} parent=5 // pred_region
        // Predicated region
        $region53: #{a_call__.1} parent=51 // pred_check
          %p312 = pneg %p58
        $region54: #{a_call__.1} parent=51 // pred_check_branch
          %314 = sbr.rel (%p312) target = $region56
        $region55: #{a_call__.1} parent=51 // pred_region
          %p315 = scmp.lt.s32.totalorder %s17, 1
          %s316 = scalar_select %p315, %s17, 1
          %s317 = smul.addr %s316, 2
          %s318 = smul.addr %s317, 4
          %s319 = scalar_lea.vmem %s1, %s318
        $region56: #{a_call__.1} parent=51 // pred_fallthru
          _
      $region52: #{a_call__.1} parent=5 // pred_fallthru
        _
      %p320 = scmp.le.s32.totalorder 1, %s17
      %p321 = scmp.lt.s32.totalorder %s17, 3
      %p322 = pnand %p320, %p321
      %p323 = pneg %p322
      // Predicated region
      $region57: #{a_call__.1} parent=5 // pred_check
        _
      $region58: #{a_call__.1} parent=5 // pred_check_branch
        %325 = sbr.rel (%p322) target = $region60
      $region59: #{a_call__.1} parent=5 // pred_region
        %s326 = ssub.s32 %s17, 1
        // Predicated region
        $region61: #{a_call__.1} parent=59 // pred_check
          %p327 = pneg %p38
        $region62: #{a_call__.1} parent=59 // pred_check_branch
          %329 = sbr.rel (%p327) target = $region64
        $region63: #{a_call__.1} parent=59 // pred_region
          %330 = dma.done [#allocation4], 16
        $region64: #{a_call__.1} parent=59 // pred_fallthru
          _
        %331 = sfence
        %p332 = pneg %p38
        %p333 = pneg %p35
        %p334 = scmp.lt.s32.totalorder %s22, 1
        %s335 = scalar_select %p334, %s22, 1
        %s336 = smul.addr %s335, 2
        %s337 = smul.addr %s336, 4
        %s338 = scalar_lea.vmem %s1, %s337
        %p339 = pneg %p64
        %p340 = pneg %p61
        %p341 = pneg %p85
        %p342 = pneg %p82
        %p343 = pneg %p106
        %p344 = pneg %p103
        %p345 = pneg %p127
        %p346 = pneg %p124
        %p347 = pneg %p148
        %p348 = pneg %p145
        %p349 = pneg %p169
        %p350 = pneg %p166
        %p351 = pneg %p190
        %p352 = pneg %p187
        %p353 = pneg %p211
        %p354 = pneg %p208
        %p355 = pneg %p232
        %p356 = pneg %p229
        %p357 = pneg %p258
        %p358 = pneg %p255
        %p359 = scmp.lt.s32.totalorder %s22, 1
        %s360 = scalar_select %p359, %s22, 1
        %s361 = smul.addr %s360, 2
        %s362 = smul.addr %s361, 4
        %s363 = scalar_lea.vmem %s10, %s362
        %p364 = scmp.lt.s32.totalorder %s22, 1
        %s365 = scalar_select %p364, %s22, 1
        %s366 = smul.addr %s365, 2
        %s367 = smul.addr %s366, 4
        %s368 = scalar_lea.vmem %s1, %s367
        %p369 = scmp.lt.s32.totalorder %s22, 1
        %s370 = scalar_select %p369, %s22, 1
        %s371 = smul.addr %s370, 2
        %s372 = smul.addr %s371, 4
        %s373 = scalar_lea.vmem %s10, %s372
        %v374 = vlaneseq
        %v375 = vand.u32 %v374, 127
        %v376 = vadd.s32 %v375, 128
        %v377 = vcvt.s32.f32 %v375
        %v378 = vcvt.s32.f32 %v376
        %v379 = vadd.f32 %v377, 0.5
        %v380 = vadd.f32 %v378, 0.5
        %v381 = vmul.f32 %v379, 0.0625
        %v382 = vmul.f32 %v380, 0.0625
        %v383 = vfloor.f32 %v381
        %v384 = vfloor.f32 %v382
        %v385 = vcvt.f32.s32.to.zero.pseudo %v383
        %v386 = vcvt.f32.s32.to.zero.pseudo %v384
        %v387 = vmul.u32 %v385, 16
        %v388 = vmul.u32 %v386, 16
        %v389 = vsub.s32 %v375, %v387
        %v390 = vsub.s32 %v376, %v388
        %vm391 = vcmp.ge.s32.totalorder %v375, 16
        %vm392 = vcmp.ge.s32.totalorder %v376, 16
        %vm393 = vcmp.lt.s32.totalorder %v375, 240
        %vm394 = vcmp.lt.s32.totalorder %v376, 240
        %vm395 = vcmp.ge.s32.totalorder %v389, 1
        %vm396 = vcmp.ge.s32.totalorder %v390, 1
        %vm397 = vcmp.lt.s32.totalorder %v389, 15
        %vm398 = vcmp.lt.s32.totalorder %v390, 15
        %vm399 = vmand %vm391, %vm395
        %vm400 = vmand %vm392, %vm396
        %v401 = vsel %vm399, 1, 0
        %v402 = vsel %vm400, 1, 0
        %v403 = vcvt.s32.f32 %v401
        %v404 = vcvt.s32.f32 %v402
        %v405 = vsel %vm391, 1, 0
        %v406 = vsel %vm392, 1, 0
        %v407 = vcvt.s32.f32 %v405
        %v408 = vcvt.s32.f32 %v406
        %vm409 = vmand %vm391, %vm397
        %vm410 = vmand %vm392, %vm398
        %v411 = vsel %vm409, 1, 0
        %v412 = vsel %vm410, 1, 0
        %v413 = vcvt.s32.f32 %v411
        %v414 = vcvt.s32.f32 %v412
        %v415 = vsel %vm395, 1, 0
        %v416 = vsel %vm396, 1, 0
        %v417 = vcvt.s32.f32 %v415
        %v418 = vcvt.s32.f32 %v416
        %v419 = vsel %vm397, 1, 0
        %v420 = vsel %vm398, 1, 0
        %v421 = vcvt.s32.f32 %v419
        %v422 = vcvt.s32.f32 %v420
        %vm423 = vmand %vm393, %vm395
        %vm424 = vmand %vm394, %vm396
        %v425 = vsel %vm423, 1, 0
        %v426 = vsel %vm424, 1, 0
        %v427 = vcvt.s32.f32 %v425
        %v428 = vcvt.s32.f32 %v426
        %v429 = vsel %vm393, 1, 0
        %v430 = vsel %vm394, 1, 0
        %v431 = vcvt.s32.f32 %v429
        %v432 = vcvt.s32.f32 %v430
        %vm433 = vmand %vm393, %vm397
        %vm434 = vmand %vm394, %vm398
        %v435 = vsel %vm433, 1, 0
        %v436 = vsel %vm434, 1, 0
        %v437 = vcvt.s32.f32 %v435
        %v438 = vcvt.s32.f32 %v436
        %v439 = vld [vmem:[%s368] sm:$0xff]
        %s440 = sld [smem:[#allocation3]]
        %v442 = vcombine.high %v439, %v439
        %444 = vst [vmem:[#allocation2 + $0x20] sm:$0xf] %v439
        %445 = vst [vmem:[#allocation2 + $0x28] sm:$0xf] %v442
        %446 = vrot.lane.b32.xlu0 %v439, 17
        %v447 = vpop.permute.xlu0 %446
        %448 = vrot.lane.b32.xlu0 %v442, 17
        %v449 = vpop.permute.xlu0 %448
        %vm450 = vcmp.lt.s32.totalorder %v375, 17
        %v451 = vsel %vm450, %v447, %v449
        %v452 = vsel %vm450, %v449, %v447
        %v453 = vmul.f32 %v452, %v403
        %v454 = vmul.f32 %v451, %v404
        %455 = vst [vmem:[#allocation2] sm:$0xf] %v453
        %456 = vst [vmem:[#allocation2 + $0x8] sm:$0xf] %v454
        %457 = vrot.lane.b32.xlu0 %v439, 16
        %v458 = vpop.permute.xlu0 %457
        %459 = vrot.lane.b32.xlu0 %v442, 16
        %v460 = vpop.permute.xlu0 %459
        %vm461 = vcmp.lt.s32.totalorder %v375, 16
        %v462 = vsel %vm461, %v458, %v460
        %v463 = vsel %vm461, %v460, %v458
        %v464 = vmul.f32 %v463, %v407
        %v465 = vmul.f32 %v462, %v408
        %v468 = vrot.slane %v464, 4
        %v469 = vrot.slane %v465, 4
        %472 = vst [vmem:[#allocation2] sm:$0xf0] %v468
        %473 = vst [vmem:[#allocation2 + $0x8] sm:$0xf0] %v469
        %474 = vrot.lane.b32.xlu0 %v439, 15
        %v475 = vpop.permute.xlu0 %474
        %476 = vrot.lane.b32.xlu0 %v442, 15
        %v477 = vpop.permute.xlu0 %476
        %vm478 = vcmp.lt.s32.totalorder %v375, 15
        %v479 = vsel %vm478, %v475, %v477
        %v480 = vsel %vm478, %v477, %v475
        %v481 = vmul.f32 %v480, %v413
        %v482 = vmul.f32 %v479, %v414
        %483 = vst [vmem:[#allocation2 + $0x10] sm:$0xf] %v481
        %484 = vst [vmem:[#allocation2 + $0x18] sm:$0xf] %v482
        %485 = vrot.lane.b32.xlu0 %v439, 1
        %v486 = vpop.permute.xlu0 %485
        %487 = vrot.lane.b32.xlu0 %v442, 1
        %v488 = vpop.permute.xlu0 %487
        %vm489 = vcmp.lt.s32.totalorder %v375, 1
        %v490 = vsel %vm489, %v486, %v488
        %v491 = vsel %vm489, %v488, %v486
        %v492 = vmul.f32 %v491, %v417
        %v493 = vmul.f32 %v490, %v418
        %v496 = vrot.slane %v492, 4
        %v497 = vrot.slane %v493, 4
        %500 = vst [vmem:[#allocation2 + $0x10] sm:$0xf0] %v496
        %501 = vst [vmem:[#allocation2 + $0x18] sm:$0xf0] %v497
        %502 = vrot.lane.b32.xlu0 %v439, 127
        %v503 = vpop.permute.xlu0 %502
        %504 = vrot.lane.b32.xlu0 %v442, 127
        %v505 = vpop.permute.xlu0 %504
        %vm506 = vcmp.lt.s32.totalorder %v375, 127
        %v507 = vsel %vm506, %v503, %v505
        %v508 = vsel %vm506, %v505, %v503
        %v509 = vmul.f32 %v507, %v421
        %v510 = vmul.f32 %v508, %v422
        %v513 = vrot.slane %v509, 4
        %v514 = vrot.slane %v510, 4
        %517 = vst [vmem:[#allocation2 + $0x20] sm:$0xf0] %v513
        %518 = vst [vmem:[#allocation2 + $0x28] sm:$0xf0] %v514
        %519 = vrot.lane.b32.xlu0 %v439, 113
        %v520 = vpop.permute.xlu0 %519
        %521 = vrot.lane.b32.xlu0 %v442, 113
        %v522 = vpop.permute.xlu0 %521
        %vm523 = vcmp.lt.s32.totalorder %v375, 113
        %v524 = vsel %vm523, %v520, %v522
        %v525 = vsel %vm523, %v522, %v520
        %v526 = vmul.f32 %v524, %v427
        %v527 = vmul.f32 %v525, %v428
        %528 = vst [vmem:[#allocation2 + $0x30] sm:$0xf] %v526
        %529 = vst [vmem:[#allocation2 + $0x38] sm:$0xf] %v527
        %530 = vrot.lane.b32.xlu0 %v439, 112
        %v531 = vpop.permute.xlu0 %530
        %532 = vrot.lane.b32.xlu0 %v442, 112
        %v533 = vpop.permute.xlu0 %532
        %vm534 = vcmp.lt.s32.totalorder %v375, 112
        %v535 = vsel %vm534, %v531, %v533
        %v536 = vsel %vm534, %v533, %v531
        %v537 = vmul.f32 %v535, %v431
        %v538 = vmul.f32 %v536, %v432
        %v541 = vrot.slane %v537, 4
        %v542 = vrot.slane %v538, 4
        %545 = vst [vmem:[#allocation2 + $0x30] sm:$0xf0] %v541
        %546 = vst [vmem:[#allocation2 + $0x38] sm:$0xf0] %v542
        %547 = vrot.lane.b32.xlu0 %v439, 111
        %v548 = vpop.permute.xlu0 %547
        %549 = vrot.lane.b32.xlu0 %v442, 111
        %v550 = vpop.permute.xlu0 %549
        %vm551 = vcmp.lt.s32.totalorder %v375, 111
        %v552 = vsel %vm551, %v548, %v550
        %v553 = vsel %vm551, %v550, %v548
        %v554 = vmul.f32 %v552, %v437
        %v555 = vmul.f32 %v553, %v438
        %556 = vst [vmem:[#allocation2 + $0x40] sm:$0xf] %v554
        %557 = vst [vmem:[#allocation2 + $0x48] sm:$0xf] %v555
        %v558 = vld [vmem:[%s2] sm:$0xff]
        %v559 = vld [vmem:[#allocation2] sm:$0xff]
        %v560 = vld [vmem:[#allocation2 + $0x8] sm:$0xff]
        %v561 = vld [vmem:[#allocation2 + $0x10] sm:$0xff]
        %v562 = vld [vmem:[#allocation2 + $0x18] sm:$0xff]
        %v563 = vld [vmem:[#allocation2 + $0x20] sm:$0xff]
        %v564 = vld [vmem:[#allocation2 + $0x28] sm:$0xff]
        %v565 = vld [vmem:[#allocation2 + $0x30] sm:$0xff]
        %v566 = vld [vmem:[#allocation2 + $0x38] sm:$0xff]
        %v567 = vld [vmem:[#allocation2 + $0x40] sm:$0xf]
        %v568 = vld [vmem:[#allocation2 + $0x48] sm:$0xf]
        %v569 = vld [vmem:[%s3] sm:$0xff]
        %571 = vset.pattern.permute.xlu0 0
        %572 = vperm.xlu0 %571, %v569
        %v573 = vpop.permute.xlu0 %572
        %vm575 = vcmask 293888
        %v577 = vsel %vm575, %v558, 0
        %vm579 = vcmask 1043456
        %v581 = vsel %vm579, %v567, 0
        %v584 = vsel %vm579, %v568, 0
        %586 = vmatprep.subr.mxu0 0.0
        %587 = vmatpush1.msra.mxu0 0.0
        %588 = vmatprep.subr.mxu0 0.0
        %589 = vmatpush1.msra.mxu0 0.0
        %590 = vmatprep.subr.mxu0 0.0
        %591 = vmatpush1.msra.mxu0 0.0
        %592 = vmatprep.subr.mxu0 0.0
        %593 = vmatpush1.msra.mxu0 0.0
        %594 = vmatprep.subr.mxu0 0.0
        %595 = vmatpush1.msra.mxu0 0.0
        %596 = vmatprep.subr.mxu0 0.0
        %597 = vmatpush1.msra.mxu0 0.0
        %598 = vmatprep.subr.mxu0 0.0
        %599 = vmatpush1.msra.mxu0 0.0
        %600 = vmatprep.subr.mxu0 0.0
        %601 = vmatpush1.msra.mxu0 0.0
        %602 = vmatprep.subr.mxu0 0.0
        %603 = vmatpush1.msra.mxu0 0.0
        %604 = vmatprep.subr.mxu0 0.0
        %605 = vmatpush1.msra.mxu0 0.0
        %606 = vmatprep.subr.mxu0 0.0
        %607 = vmatpush1.msra.mxu0 0.0
        %608 = vmatprep.subr.mxu0 %v584
        %609 = vmatpush1.msra.mxu0 %v581
        %610 = vmatprep.subr.mxu0 %v566
        %611 = vmatpush1.msra.mxu0 %v565
        %612 = vmatprep.subr.mxu0 %v564
        %613 = vmatpush1.msra.mxu0 %v563
        %614 = vmatprep.subr.mxu0 %v562
        %615 = vmatpush1.msra.mxu0 %v561
        %616 = vmatprep.subr.mxu0 %v560
        %617 = vmatpush1.msra.mxu0 %v559
        %618 = vmatprep.subr.mxu0 0.0
        %619 = vmatpush2.msra.mxu0 0.0
        %620 = vmatprep.subr.mxu0 0.0
        %621 = vmatpush2.msra.mxu0 0.0
        %622 = vmatprep.subr.mxu0 0.0
        %623 = vmatpush2.msra.mxu0 0.0
        %624 = vmatprep.subr.mxu0 0.0
        %625 = vmatpush2.msra.mxu0 0.0
        %626 = vmatprep.subr.mxu0 0.0
        %627 = vmatpush2.msra.mxu0 0.0
        %628 = vmatprep.subr.mxu0 0.0
        %629 = vmatpush2.msra.mxu0 0.0
        %630 = vmatprep.subr.mxu0 0.0
        %631 = vmatpush2.msra.mxu0 0.0
        %632 = vmatprep.subr.mxu0 0.0
        %633 = vmatpush2.msra.mxu0 0.0
        %634 = vmatprep.subr.mxu0 0.0
        %635 = vmatpush2.msra.mxu0 0.0
        %636 = vmatprep.subr.mxu0 0.0
        %637 = vmatpush2.msra.mxu0 0.0
        %638 = vmatprep.subr.mxu0 0.0
        %639 = vmatpush2.msra.mxu0 0.0
        %640 = vmatprep.subr.mxu0 0.0
        %641 = vmatpush2.msra.mxu0 0.0
        %642 = vmatprep.subr.mxu0 0.0
        %643 = vmatpush2.msra.mxu0 0.0
        %644 = vmatprep.subr.mxu0 0.0
        %645 = vmatpush2.msra.mxu0 0.0
        %646 = vmatprep.subr.mxu0 0.0
        %647 = vmatpush2.msra.mxu0 0.0
        %648 = vmatprep.subr.mxu0 0.0
        %649 = vmatpush2.msra.mxu0 0.0
        %650 = vmatprep.mubr.f32.mxu0 0.0
        %651 = vmatmul.mubr.f32.gmra.mxu0 %v577
        %v652 = vpop.f32.mrf.mxu0
        %v653 = vadd.f32 %v573, %v652
        %v654 = vpop.f32.mrf.mxu0
        %v655 = vadd.f32 %v573, %v654
        %656 = vdwg.mxu0
        %vm657 = vcmp.gt.f32.partialorder %v653, 0.0
        %vm658 = vcmp.gt.f32.partialorder %v655, 0.0
        %v659 = vstv %s440
        %v660 = vmul.f32 %v659, %v653
        %v661 = vmul.f32 %v659, %v655
        %v662 = vsel %vm657, %v653, %v660
        %v663 = vsel %vm658, %v655, %v661
        %s664 = sld [smem:[#allocation3 + $0x1]]
        %665 = vst [vmem:[#allocation2 + $0x40] sm:$0xff] %v662
        %666 = vst [vmem:[#allocation2 + $0x48] sm:$0xff] %v663
        %667 = vrot.lane.b32.xlu0 %v662, 17
        %v668 = vpop.permute.xlu0 %667
        %669 = vrot.lane.b32.xlu0 %v663, 17
        %v670 = vpop.permute.xlu0 %669
        %v671 = vsel %vm450, %v668, %v670
        %v672 = vsel %vm450, %v670, %v668
        %v673 = vmul.f32 %v672, %v403
        %v674 = vmul.f32 %v671, %v404
        %675 = vst [vmem:[#allocation2] sm:$0xff] %v673
        %676 = vst [vmem:[#allocation2 + $0x8] sm:$0xff] %v674
        %677 = vrot.lane.b32.xlu0 %v662, 16
        %v678 = vpop.permute.xlu0 %677
        %679 = vrot.lane.b32.xlu0 %v663, 16
        %v680 = vpop.permute.xlu0 %679
        %v681 = vsel %vm461, %v678, %v680
        %v682 = vsel %vm461, %v680, %v678
        %v683 = vmul.f32 %v682, %v407
        %v684 = vmul.f32 %v681, %v408
        %685 = vst [vmem:[#allocation2 + $0x10] sm:$0xff] %v683
        %686 = vst [vmem:[#allocation2 + $0x18] sm:$0xff] %v684
        %687 = vrot.lane.b32.xlu0 %v662, 15
        %v688 = vpop.permute.xlu0 %687
        %689 = vrot.lane.b32.xlu0 %v663, 15
        %v690 = vpop.permute.xlu0 %689
        %v691 = vsel %vm478, %v688, %v690
        %v692 = vsel %vm478, %v690, %v688
        %v693 = vmul.f32 %v692, %v413
        %v694 = vmul.f32 %v691, %v414
        %695 = vst [vmem:[#allocation2 + $0x20] sm:$0xff] %v693
        %696 = vst [vmem:[#allocation2 + $0x28] sm:$0xff] %v694
        %697 = vrot.lane.b32.xlu0 %v662, 1
        %v698 = vpop.permute.xlu0 %697
        %699 = vrot.lane.b32.xlu0 %v663, 1
        %v700 = vpop.permute.xlu0 %699
        %v701 = vsel %vm489, %v698, %v700
        %v702 = vsel %vm489, %v700, %v698
        %v703 = vmul.f32 %v702, %v417
        %v704 = vmul.f32 %v701, %v418
        %705 = vst [vmem:[#allocation2 + $0x30] sm:$0xff] %v703
        %706 = vst [vmem:[#allocation2 + $0x38] sm:$0xff] %v704
        %707 = vrot.lane.b32.xlu0 %v662, 127
        %v708 = vpop.permute.xlu0 %707
        %709 = vrot.lane.b32.xlu0 %v663, 127
        %v710 = vpop.permute.xlu0 %709
        %v711 = vsel %vm506, %v708, %v710
        %v712 = vsel %vm506, %v710, %v708
        %v713 = vmul.f32 %v711, %v421
        %v714 = vmul.f32 %v712, %v422
        %715 = vst [vmem:[#allocation2 + $0x50] sm:$0xff] %v713
        %716 = vst [vmem:[#allocation2 + $0x58] sm:$0xff] %v714
        %717 = vrot.lane.b32.xlu0 %v662, 113
        %v718 = vpop.permute.xlu0 %717
        %719 = vrot.lane.b32.xlu0 %v663, 113
        %v720 = vpop.permute.xlu0 %719
        %v721 = vsel %vm523, %v718, %v720
        %v722 = vsel %vm523, %v720, %v718
        %v723 = vmul.f32 %v721, %v427
        %v724 = vmul.f32 %v722, %v428
        %725 = vst [vmem:[#allocation2 + $0x60] sm:$0xff] %v723
        %726 = vst [vmem:[#allocation2 + $0x68] sm:$0xff] %v724
        %727 = vrot.lane.b32.xlu0 %v662, 112
        %v728 = vpop.permute.xlu0 %727
        %729 = vrot.lane.b32.xlu0 %v663, 112
        %v730 = vpop.permute.xlu0 %729
        %v731 = vsel %vm534, %v728, %v730
        %v732 = vsel %vm534, %v730, %v728
        %v733 = vmul.f32 %v731, %v431
        %v734 = vmul.f32 %v732, %v432
        %735 = vst [vmem:[#allocation2 + $0x70] sm:$0xff] %v733
        %736 = vst [vmem:[#allocation2 + $0x78] sm:$0xff] %v734
        %737 = vrot.lane.b32.xlu0 %v662, 111
        %v738 = vpop.permute.xlu0 %737
        %739 = vrot.lane.b32.xlu0 %v663, 111
        %v740 = vpop.permute.xlu0 %739
        %v741 = vsel %vm551, %v738, %v740
        %v742 = vsel %vm551, %v740, %v738
        %v743 = vmul.f32 %v741, %v437
        %v744 = vmul.f32 %v742, %v438
        %745 = vst [vmem:[#allocation2 + $0x80] sm:$0xff] %v743
        %746 = vst [vmem:[#allocation2 + $0x88] sm:$0xff] %v744
        %v747 = vld [vmem:[%s4] sm:$0xff]
        %v748 = vld [vmem:[#allocation2] sm:$0xff]
        %v749 = vld [vmem:[#allocation2 + $0x8] sm:$0xff]
        %v750 = vld [vmem:[#allocation2 + $0x10] sm:$0xff]
        %v751 = vld [vmem:[#allocation2 + $0x18] sm:$0xff]
        %v752 = vld [vmem:[#allocation2 + $0x20] sm:$0xff]
        %v753 = vld [vmem:[#allocation2 + $0x28] sm:$0xff]
        %v754 = vld [vmem:[#allocation2 + $0x30] sm:$0xff]
        %v755 = vld [vmem:[#allocation2 + $0x38] sm:$0xff]
        %v756 = vld [vmem:[#allocation2 + $0x40] sm:$0xff]
        %v757 = vld [vmem:[#allocation2 + $0x48] sm:$0xff]
        %v758 = vld [vmem:[#allocation2 + $0x50] sm:$0xff]
        %v759 = vld [vmem:[#allocation2 + $0x58] sm:$0xff]
        %v760 = vld [vmem:[#allocation2 + $0x60] sm:$0xff]
        %v761 = vld [vmem:[#allocation2 + $0x68] sm:$0xff]
        %v762 = vld [vmem:[#allocation2 + $0x70] sm:$0xff]
        %v763 = vld [vmem:[#allocation2 + $0x78] sm:$0xff]
        %v764 = vld [vmem:[#allocation2 + $0x80] sm:$0xff]
        %v765 = vld [vmem:[#allocation2 + $0x88] sm:$0xff]
        %v766 = vld [vmem:[%s5] sm:$0xff]
        %768 = vset.pattern.permute.xlu0 0
        %769 = vperm.xlu0 %768, %v766
        %v770 = vpop.permute.xlu0 %769
        %vm772 = vcmask 588800
        %v774 = vsel %vm772, %v747, 0
        %776 = vmatprep.subr.mxu0 0.0
        %777 = vmatpush1.msra.mxu0 0.0
        %778 = vmatprep.subr.mxu0 0.0
        %779 = vmatpush1.msra.mxu0 0.0
        %780 = vmatprep.subr.mxu0 0.0
        %781 = vmatpush1.msra.mxu0 0.0
        %782 = vmatprep.subr.mxu0 0.0
        %783 = vmatpush1.msra.mxu0 0.0
        %784 = vmatprep.subr.mxu0 0.0
        %785 = vmatpush1.msra.mxu0 0.0
        %786 = vmatprep.subr.mxu0 0.0
        %787 = vmatpush1.msra.mxu0 0.0
        %788 = vmatprep.subr.mxu0 0.0
        %789 = vmatpush1.msra.mxu0 0.0
        %790 = vmatprep.subr.mxu0 %v765
        %791 = vmatpush1.msra.mxu0 %v764
        %792 = vmatprep.subr.mxu0 %v763
        %793 = vmatpush1.msra.mxu0 %v762
        %794 = vmatprep.subr.mxu0 %v761
        %795 = vmatpush1.msra.mxu0 %v760
        %796 = vmatprep.subr.mxu0 %v759
        %797 = vmatpush1.msra.mxu0 %v758
        %798 = vmatprep.subr.mxu0 %v757
        %799 = vmatpush1.msra.mxu0 %v756
        %800 = vmatprep.subr.mxu0 %v755
        %801 = vmatpush1.msra.mxu0 %v754
        %802 = vmatprep.subr.mxu0 %v753
        %803 = vmatpush1.msra.mxu0 %v752
        %804 = vmatprep.subr.mxu0 %v751
        %805 = vmatpush1.msra.mxu0 %v750
        %806 = vmatprep.subr.mxu0 %v749
        %807 = vmatpush1.msra.mxu0 %v748
        %808 = vmatprep.subr.mxu0 0.0
        %809 = vmatpush2.msra.mxu0 0.0
        %810 = vmatprep.subr.mxu0 0.0
        %811 = vmatpush2.msra.mxu0 0.0
        %812 = vmatprep.subr.mxu0 0.0
        %813 = vmatpush2.msra.mxu0 0.0
        %814 = vmatprep.subr.mxu0 0.0
        %815 = vmatpush2.msra.mxu0 0.0
        %816 = vmatprep.subr.mxu0 0.0
        %817 = vmatpush2.msra.mxu0 0.0
        %818 = vmatprep.subr.mxu0 0.0
        %819 = vmatpush2.msra.mxu0 0.0
        %820 = vmatprep.subr.mxu0 0.0
        %821 = vmatpush2.msra.mxu0 0.0
        %822 = vmatprep.subr.mxu0 0.0
        %823 = vmatpush2.msra.mxu0 0.0
        %824 = vmatprep.subr.mxu0 0.0
        %825 = vmatpush2.msra.mxu0 0.0
        %826 = vmatprep.subr.mxu0 0.0
        %827 = vmatpush2.msra.mxu0 0.0
        %828 = vmatprep.subr.mxu0 0.0
        %829 = vmatpush2.msra.mxu0 0.0
        %830 = vmatprep.subr.mxu0 0.0
        %831 = vmatpush2.msra.mxu0 0.0
        %832 = vmatprep.subr.mxu0 0.0
        %833 = vmatpush2.msra.mxu0 0.0
        %834 = vmatprep.subr.mxu0 0.0
        %835 = vmatpush2.msra.mxu0 0.0
        %836 = vmatprep.subr.mxu0 0.0
        %837 = vmatpush2.msra.mxu0 0.0
        %838 = vmatprep.subr.mxu0 0.0
        %839 = vmatpush2.msra.mxu0 0.0
        %840 = vmatprep.mubr.f32.mxu0 0.0
        %841 = vmatmul.mubr.f32.gmra.mxu0 %v774
        %v842 = vpop.f32.mrf.mxu0
        %v843 = vadd.f32 %v770, %v842
        %v844 = vpop.f32.mrf.mxu0
        %v845 = vadd.f32 %v770, %v844
        %846 = vdwg.mxu0
        %vm847 = vcmp.gt.f32.partialorder %v843, 0.0
        %vm848 = vcmp.gt.f32.partialorder %v845, 0.0
        %v849 = vstv %s664
        %v850 = vmul.f32 %v849, %v843
        %v851 = vmul.f32 %v849, %v845
        %v852 = vsel %vm847, %v843, %v850
        %v853 = vsel %vm848, %v845, %v851
        %s854 = sld [smem:[#allocation3 + $0x2]]
        %855 = vst [vmem:[#allocation2 + $0x40] sm:$0xff] %v852
        %856 = vst [vmem:[#allocation2 + $0x48] sm:$0xff] %v853
        %857 = vrot.lane.b32.xlu0 %v852, 17
        %v858 = vpop.permute.xlu0 %857
        %859 = vrot.lane.b32.xlu0 %v853, 17
        %v860 = vpop.permute.xlu0 %859
        %v861 = vsel %vm450, %v858, %v860
        %v862 = vsel %vm450, %v860, %v858
        %v863 = vmul.f32 %v862, %v403
        %v864 = vmul.f32 %v861, %v404
        %865 = vst [vmem:[#allocation2] sm:$0xff] %v863
        %866 = vst [vmem:[#allocation2 + $0x8] sm:$0xff] %v864
        %867 = vrot.lane.b32.xlu0 %v852, 16
        %v868 = vpop.permute.xlu0 %867
        %869 = vrot.lane.b32.xlu0 %v853, 16
        %v870 = vpop.permute.xlu0 %869
        %v871 = vsel %vm461, %v868, %v870
        %v872 = vsel %vm461, %v870, %v868
        %v873 = vmul.f32 %v872, %v407
        %v874 = vmul.f32 %v871, %v408
        %875 = vst [vmem:[#allocation2 + $0x10] sm:$0xff] %v873
        %876 = vst [vmem:[#allocation2 + $0x18] sm:$0xff] %v874
        %877 = vrot.lane.b32.xlu0 %v852, 15
        %v878 = vpop.permute.xlu0 %877
        %879 = vrot.lane.b32.xlu0 %v853, 15
        %v880 = vpop.permute.xlu0 %879
        %v881 = vsel %vm478, %v878, %v880
        %v882 = vsel %vm478, %v880, %v878
        %v883 = vmul.f32 %v882, %v413
        %v884 = vmul.f32 %v881, %v414
        %885 = vst [vmem:[#allocation2 + $0x20] sm:$0xff] %v883
        %886 = vst [vmem:[#allocation2 + $0x28] sm:$0xff] %v884
        %887 = vrot.lane.b32.xlu0 %v852, 1
        %v888 = vpop.permute.xlu0 %887
        %889 = vrot.lane.b32.xlu0 %v853, 1
        %v890 = vpop.permute.xlu0 %889
        %v891 = vsel %vm489, %v888, %v890
        %v892 = vsel %vm489, %v890, %v888
        %v893 = vmul.f32 %v892, %v417
        %v894 = vmul.f32 %v891, %v418
        %895 = vst [vmem:[#allocation2 + $0x30] sm:$0xff] %v893
        %896 = vst [vmem:[#allocation2 + $0x38] sm:$0xff] %v894
        %897 = vrot.lane.b32.xlu0 %v852, 127
        %v898 = vpop.permute.xlu0 %897
        %899 = vrot.lane.b32.xlu0 %v853, 127
        %v900 = vpop.permute.xlu0 %899
        %v901 = vsel %vm506, %v898, %v900
        %v902 = vsel %vm506, %v900, %v898
        %v903 = vmul.f32 %v901, %v421
        %v904 = vmul.f32 %v902, %v422
        %905 = vst [vmem:[#allocation2 + $0x50] sm:$0xff] %v903
        %906 = vst [vmem:[#allocation2 + $0x58] sm:$0xff] %v904
        %907 = vrot.lane.b32.xlu0 %v852, 113
        %v908 = vpop.permute.xlu0 %907
        %909 = vrot.lane.b32.xlu0 %v853, 113
        %v910 = vpop.permute.xlu0 %909
        %v911 = vsel %vm523, %v908, %v910
        %v912 = vsel %vm523, %v910, %v908
        %v913 = vmul.f32 %v911, %v427
        %v914 = vmul.f32 %v912, %v428
        %915 = vst [vmem:[#allocation2 + $0x60] sm:$0xff] %v913
        %916 = vst [vmem:[#allocation2 + $0x68] sm:$0xff] %v914
        %917 = vrot.lane.b32.xlu0 %v852, 112
        %v918 = vpop.permute.xlu0 %917
        %919 = vrot.lane.b32.xlu0 %v853, 112
        %v920 = vpop.permute.xlu0 %919
        %v921 = vsel %vm534, %v918, %v920
        %v922 = vsel %vm534, %v920, %v918
        %v923 = vmul.f32 %v921, %v431
        %v924 = vmul.f32 %v922, %v432
        %925 = vst [vmem:[#allocation2 + $0x70] sm:$0xff] %v923
        %926 = vst [vmem:[#allocation2 + $0x78] sm:$0xff] %v924
        %927 = vrot.lane.b32.xlu0 %v852, 111
        %v928 = vpop.permute.xlu0 %927
        %929 = vrot.lane.b32.xlu0 %v853, 111
        %v930 = vpop.permute.xlu0 %929
        %v931 = vsel %vm551, %v928, %v930
        %v932 = vsel %vm551, %v930, %v928
        %v933 = vmul.f32 %v931, %v437
        %v934 = vmul.f32 %v932, %v438
        %935 = vst [vmem:[#allocation2 + $0x80] sm:$0xff] %v933
        %936 = vst [vmem:[#allocation2 + $0x88] sm:$0xff] %v934
        %v937 = vld [vmem:[%s6] sm:$0xff]
        %v938 = vld [vmem:[#allocation2] sm:$0xff]
        %v939 = vld [vmem:[#allocation2 + $0x8] sm:$0xff]
        %v940 = vld [vmem:[#allocation2 + $0x10] sm:$0xff]
        %v941 = vld [vmem:[#allocation2 + $0x18] sm:$0xff]
        %v942 = vld [vmem:[#allocation2 + $0x20] sm:$0xff]
        %v943 = vld [vmem:[#allocation2 + $0x28] sm:$0xff]
        %v944 = vld [vmem:[#allocation2 + $0x30] sm:$0xff]
        %v945 = vld [vmem:[#allocation2 + $0x38] sm:$0xff]
        %v946 = vld [vmem:[#allocation2 + $0x40] sm:$0xff]
        %v947 = vld [vmem:[#allocation2 + $0x48] sm:$0xff]
        %v948 = vld [vmem:[#allocation2 + $0x50] sm:$0xff]
        %v949 = vld [vmem:[#allocation2 + $0x58] sm:$0xff]
        %v950 = vld [vmem:[#allocation2 + $0x60] sm:$0xff]
        %v951 = vld [vmem:[#allocation2 + $0x68] sm:$0xff]
        %v952 = vld [vmem:[#allocation2 + $0x70] sm:$0xff]
        %v953 = vld [vmem:[#allocation2 + $0x78] sm:$0xff]
        %v954 = vld [vmem:[#allocation2 + $0x80] sm:$0xff]
        %v955 = vld [vmem:[#allocation2 + $0x88] sm:$0xff]
        %v956 = vld [vmem:[%s7] sm:$0xff]
        %958 = vset.pattern.permute.xlu0 0
        %959 = vperm.xlu0 %958, %v956
        %v960 = vpop.permute.xlu0 %959
        %v963 = vsel %vm772, %v937, 0
        %965 = vmatprep.subr.mxu0 0.0
        %966 = vmatpush1.msra.mxu0 0.0
        %967 = vmatprep.subr.mxu0 0.0
        %968 = vmatpush1.msra.mxu0 0.0
        %969 = vmatprep.subr.mxu0 0.0
        %970 = vmatpush1.msra.mxu0 0.0
        %971 = vmatprep.subr.mxu0 0.0
        %972 = vmatpush1.msra.mxu0 0.0
        %973 = vmatprep.subr.mxu0 0.0
        %974 = vmatpush1.msra.mxu0 0.0
        %975 = vmatprep.subr.mxu0 0.0
        %976 = vmatpush1.msra.mxu0 0.0
        %977 = vmatprep.subr.mxu0 0.0
        %978 = vmatpush1.msra.mxu0 0.0
        %979 = vmatprep.subr.mxu0 %v955
        %980 = vmatpush1.msra.mxu0 %v954
        %981 = vmatprep.subr.mxu0 %v953
        %982 = vmatpush1.msra.mxu0 %v952
        %983 = vmatprep.subr.mxu0 %v951
        %984 = vmatpush1.msra.mxu0 %v950
        %985 = vmatprep.subr.mxu0 %v949
        %986 = vmatpush1.msra.mxu0 %v948
        %987 = vmatprep.subr.mxu0 %v947
        %988 = vmatpush1.msra.mxu0 %v946
        %989 = vmatprep.subr.mxu0 %v945
        %990 = vmatpush1.msra.mxu0 %v944
        %991 = vmatprep.subr.mxu0 %v943
        %992 = vmatpush1.msra.mxu0 %v942
        %993 = vmatprep.subr.mxu0 %v941
        %994 = vmatpush1.msra.mxu0 %v940
        %995 = vmatprep.subr.mxu0 %v939
        %996 = vmatpush1.msra.mxu0 %v938
        %997 = vmatprep.subr.mxu0 0.0
        %998 = vmatpush2.msra.mxu0 0.0
        %999 = vmatprep.subr.mxu0 0.0
        %1000 = vmatpush2.msra.mxu0 0.0
        %1001 = vmatprep.subr.mxu0 0.0
        %1002 = vmatpush2.msra.mxu0 0.0
        %1003 = vmatprep.subr.mxu0 0.0
        %1004 = vmatpush2.msra.mxu0 0.0
        %1005 = vmatprep.subr.mxu0 0.0
        %1006 = vmatpush2.msra.mxu0 0.0
        %1007 = vmatprep.subr.mxu0 0.0
        %1008 = vmatpush2.msra.mxu0 0.0
        %1009 = vmatprep.subr.mxu0 0.0
        %1010 = vmatpush2.msra.mxu0 0.0
        %1011 = vmatprep.subr.mxu0 0.0
        %1012 = vmatpush2.msra.mxu0 0.0
        %1013 = vmatprep.subr.mxu0 0.0
        %1014 = vmatpush2.msra.mxu0 0.0
        %1015 = vmatprep.subr.mxu0 0.0
        %1016 = vmatpush2.msra.mxu0 0.0
        %1017 = vmatprep.subr.mxu0 0.0
        %1018 = vmatpush2.msra.mxu0 0.0
        %1019 = vmatprep.subr.mxu0 0.0
        %1020 = vmatpush2.msra.mxu0 0.0
        %1021 = vmatprep.subr.mxu0 0.0
        %1022 = vmatpush2.msra.mxu0 0.0
        %1023 = vmatprep.subr.mxu0 0.0
        %1024 = vmatpush2.msra.mxu0 0.0
        %1025 = vmatprep.subr.mxu0 0.0
        %1026 = vmatpush2.msra.mxu0 0.0
        %1027 = vmatprep.subr.mxu0 0.0
        %1028 = vmatpush2.msra.mxu0 0.0
        %1029 = vmatprep.mubr.f32.mxu0 0.0
        %1030 = vmatmul.mubr.f32.gmra.mxu0 %v963
        %v1031 = vpop.f32.mrf.mxu0
        %v1032 = vadd.f32 %v960, %v1031
        %v1033 = vpop.f32.mrf.mxu0
        %v1034 = vadd.f32 %v960, %v1033
        %1035 = vdwg.mxu0
        %vm1036 = vcmp.gt.f32.partialorder %v1032, 0.0
        %vm1037 = vcmp.gt.f32.partialorder %v1034, 0.0
        %v1038 = vstv %s854
        %v1039 = vmul.f32 %v1038, %v1032
        %v1040 = vmul.f32 %v1038, %v1034
        %v1041 = vsel %vm1036, %v1032, %v1039
        %v1042 = vsel %vm1037, %v1034, %v1040
        %1043 = vst [vmem:[#allocation2 + $0x40] sm:$0xff] %v1041
        %1044 = vst [vmem:[#allocation2 + $0x48] sm:$0xff] %v1042
        %1045 = vrot.lane.b32.xlu0 %v1041, 17
        %v1046 = vpop.permute.xlu0 %1045
        %1047 = vrot.lane.b32.xlu0 %v1042, 17
        %v1048 = vpop.permute.xlu0 %1047
        %v1049 = vsel %vm450, %v1046, %v1048
        %v1050 = vsel %vm450, %v1048, %v1046
        %v1051 = vmul.f32 %v1050, %v403
        %v1052 = vmul.f32 %v1049, %v404
        %1053 = vst [vmem:[#allocation2] sm:$0xff] %v1051
        %1054 = vst [vmem:[#allocation2 + $0x8] sm:$0xff] %v1052
        %1055 = vrot.lane.b32.xlu0 %v1041, 16
        %v1056 = vpop.permute.xlu0 %1055
        %1057 = vrot.lane.b32.xlu0 %v1042, 16
        %v1058 = vpop.permute.xlu0 %1057
        %v1059 = vsel %vm461, %v1056, %v1058
        %v1060 = vsel %vm461, %v1058, %v1056
        %v1061 = vmul.f32 %v1060, %v407
        %v1062 = vmul.f32 %v1059, %v408
        %1063 = vst [vmem:[#allocation2 + $0x10] sm:$0xff] %v1061
        %1064 = vst [vmem:[#allocation2 + $0x18] sm:$0xff] %v1062
        %1065 = vrot.lane.b32.xlu0 %v1041, 15
        %v1066 = vpop.permute.xlu0 %1065
        %1067 = vrot.lane.b32.xlu0 %v1042, 15
        %v1068 = vpop.permute.xlu0 %1067
        %v1069 = vsel %vm478, %v1066, %v1068
        %v1070 = vsel %vm478, %v1068, %v1066
        %v1071 = vmul.f32 %v1070, %v413
        %v1072 = vmul.f32 %v1069, %v414
        %1073 = vst [vmem:[#allocation2 + $0x20] sm:$0xff] %v1071
        %1074 = vst [vmem:[#allocation2 + $0x28] sm:$0xff] %v1072
        %1075 = vrot.lane.b32.xlu0 %v1041, 1
        %v1076 = vpop.permute.xlu0 %1075
        %1077 = vrot.lane.b32.xlu0 %v1042, 1
        %v1078 = vpop.permute.xlu0 %1077
        %v1079 = vsel %vm489, %v1076, %v1078
        %v1080 = vsel %vm489, %v1078, %v1076
        %v1081 = vmul.f32 %v1080, %v417
        %v1082 = vmul.f32 %v1079, %v418
        %1083 = vst [vmem:[#allocation2 + $0x30] sm:$0xff] %v1081
        %1084 = vst [vmem:[#allocation2 + $0x38] sm:$0xff] %v1082
        %1085 = vrot.lane.b32.xlu0 %v1041, 127
        %v1086 = vpop.permute.xlu0 %1085
        %1087 = vrot.lane.b32.xlu0 %v1042, 127
        %v1088 = vpop.permute.xlu0 %1087
        %v1089 = vsel %vm506, %v1086, %v1088
        %v1090 = vsel %vm506, %v1088, %v1086
        %v1091 = vmul.f32 %v1089, %v421
        %v1092 = vmul.f32 %v1090, %v422
        %1093 = vst [vmem:[#allocation2 + $0x50] sm:$0xff] %v1091
        %1094 = vst [vmem:[#allocation2 + $0x58] sm:$0xff] %v1092
        %1095 = vrot.lane.b32.xlu0 %v1041, 113
        %v1096 = vpop.permute.xlu0 %1095
        %1097 = vrot.lane.b32.xlu0 %v1042, 113
        %v1098 = vpop.permute.xlu0 %1097
        %v1099 = vsel %vm523, %v1096, %v1098
        %v1100 = vsel %vm523, %v1098, %v1096
        %v1101 = vmul.f32 %v1099, %v427
        %v1102 = vmul.f32 %v1100, %v428
        %1103 = vst [vmem:[#allocation2 + $0x60] sm:$0xff] %v1101
        %1104 = vst [vmem:[#allocation2 + $0x68] sm:$0xff] %v1102
        %1105 = vrot.lane.b32.xlu0 %v1041, 112
        %v1106 = vpop.permute.xlu0 %1105
        %1107 = vrot.lane.b32.xlu0 %v1042, 112
        %v1108 = vpop.permute.xlu0 %1107
        %v1109 = vsel %vm534, %v1106, %v1108
        %v1110 = vsel %vm534, %v1108, %v1106
        %v1111 = vmul.f32 %v1109, %v431
        %v1112 = vmul.f32 %v1110, %v432
        %1113 = vst [vmem:[#allocation2 + $0x70] sm:$0xff] %v1111
        %1114 = vst [vmem:[#allocation2 + $0x78] sm:$0xff] %v1112
        %1115 = vrot.lane.b32.xlu0 %v1041, 111
        %v1116 = vpop.permute.xlu0 %1115
        %1117 = vrot.lane.b32.xlu0 %v1042, 111
        %v1118 = vpop.permute.xlu0 %1117
        %v1119 = vsel %vm551, %v1116, %v1118
        %v1120 = vsel %vm551, %v1118, %v1116
        %v1121 = vmul.f32 %v1119, %v437
        %v1122 = vmul.f32 %v1120, %v438
        %1123 = vst [vmem:[#allocation2 + $0x80] sm:$0xff] %v1121
        %1124 = vst [vmem:[#allocation2 + $0x88] sm:$0xff] %v1122
        %v1125 = vld [vmem:[%s8] sm:$0xf]
        %v1126 = vld [vmem:[#allocation2] sm:$0xff]
        %v1127 = vld [vmem:[#allocation2 + $0x8] sm:$0xff]
        %v1128 = vld [vmem:[#allocation2 + $0x10] sm:$0xff]
        %v1129 = vld [vmem:[#allocation2 + $0x18] sm:$0xff]
        %v1130 = vld [vmem:[#allocation2 + $0x20] sm:$0xff]
        %v1131 = vld [vmem:[#allocation2 + $0x28] sm:$0xff]
        %v1132 = vld [vmem:[#allocation2 + $0x30] sm:$0xff]
        %v1133 = vld [vmem:[#allocation2 + $0x38] sm:$0xff]
        %v1134 = vld [vmem:[#allocation2 + $0x40] sm:$0xff]
        %v1135 = vld [vmem:[#allocation2 + $0x48] sm:$0xff]
        %v1136 = vld [vmem:[#allocation2 + $0x50] sm:$0xff]
        %v1137 = vld [vmem:[#allocation2 + $0x58] sm:$0xff]
        %v1138 = vld [vmem:[#allocation2 + $0x60] sm:$0xff]
        %v1139 = vld [vmem:[#allocation2 + $0x68] sm:$0xff]
        %v1140 = vld [vmem:[#allocation2 + $0x70] sm:$0xff]
        %v1141 = vld [vmem:[#allocation2 + $0x78] sm:$0xff]
        %v1142 = vld [vmem:[#allocation2 + $0x80] sm:$0xff]
        %v1143 = vld [vmem:[#allocation2 + $0x88] sm:$0xff]
        %v1144 = vld [vmem:[%s9] sm:$0xf]
        %1146 = vset.pattern.permute.xlu0 0
        %1147 = vperm.xlu0 %1146, %v1144
        %v1148 = vpop.permute.xlu0 %1147
        %v1151 = vsel %vm772, %v1125, 0
        %1153 = vmatprep.subr.mxu0 0.0
        %1154 = vmatpush1.msra.mxu0 0.0
        %1155 = vmatprep.subr.mxu0 0.0
        %1156 = vmatpush1.msra.mxu0 0.0
        %1157 = vmatprep.subr.mxu0 0.0
        %1158 = vmatpush1.msra.mxu0 0.0
        %1159 = vmatprep.subr.mxu0 0.0
        %1160 = vmatpush1.msra.mxu0 0.0
        %1161 = vmatprep.subr.mxu0 0.0
        %1162 = vmatpush1.msra.mxu0 0.0
        %1163 = vmatprep.subr.mxu0 0.0
        %1164 = vmatpush1.msra.mxu0 0.0
        %1165 = vmatprep.subr.mxu0 0.0
        %1166 = vmatpush1.msra.mxu0 0.0
        %1167 = vmatprep.subr.mxu0 %v1143
        %1168 = vmatpush1.msra.mxu0 %v1142
        %1169 = vmatprep.subr.mxu0 %v1141
        %1170 = vmatpush1.msra.mxu0 %v1140
        %1171 = vmatprep.subr.mxu0 %v1139
        %1172 = vmatpush1.msra.mxu0 %v1138
        %1173 = vmatprep.subr.mxu0 %v1137
        %1174 = vmatpush1.msra.mxu0 %v1136
        %1175 = vmatprep.subr.mxu0 %v1135
        %1176 = vmatpush1.msra.mxu0 %v1134
        %1177 = vmatprep.subr.mxu0 %v1133
        %1178 = vmatpush1.msra.mxu0 %v1132
        %1179 = vmatprep.subr.mxu0 %v1131
        %1180 = vmatpush1.msra.mxu0 %v1130
        %1181 = vmatprep.subr.mxu0 %v1129
        %1182 = vmatpush1.msra.mxu0 %v1128
        %1183 = vmatprep.subr.mxu0 %v1127
        %1184 = vmatpush1.msra.mxu0 %v1126
        %1185 = vmatprep.subr.mxu0 0.0
        %1186 = vmatpush2.msra.mxu0 0.0
        %1187 = vmatprep.subr.mxu0 0.0
        %1188 = vmatpush2.msra.mxu0 0.0
        %1189 = vmatprep.subr.mxu0 0.0
        %1190 = vmatpush2.msra.mxu0 0.0
        %1191 = vmatprep.subr.mxu0 0.0
        %1192 = vmatpush2.msra.mxu0 0.0
        %1193 = vmatprep.subr.mxu0 0.0
        %1194 = vmatpush2.msra.mxu0 0.0
        %1195 = vmatprep.subr.mxu0 0.0
        %1196 = vmatpush2.msra.mxu0 0.0
        %1197 = vmatprep.subr.mxu0 0.0
        %1198 = vmatpush2.msra.mxu0 0.0
        %1199 = vmatprep.subr.mxu0 0.0
        %1200 = vmatpush2.msra.mxu0 0.0
        %1201 = vmatprep.subr.mxu0 0.0
        %1202 = vmatpush2.msra.mxu0 0.0
        %1203 = vmatprep.subr.mxu0 0.0
        %1204 = vmatpush2.msra.mxu0 0.0
        %1205 = vmatprep.subr.mxu0 0.0
        %1206 = vmatpush2.msra.mxu0 0.0
        %1207 = vmatprep.subr.mxu0 0.0
        %1208 = vmatpush2.msra.mxu0 0.0
        %1209 = vmatprep.subr.mxu0 0.0
        %1210 = vmatpush2.msra.mxu0 0.0
        %1211 = vmatprep.subr.mxu0 0.0
        %1212 = vmatpush2.msra.mxu0 0.0
        %1213 = vmatprep.subr.mxu0 0.0
        %1214 = vmatpush2.msra.mxu0 0.0
        %1215 = vmatprep.subr.mxu0 0.0
        %1216 = vmatpush2.msra.mxu0 0.0
        %1217 = vmatprep.mubr.f32.mxu0 0.0
        %1218 = vmatmul.mubr.f32.gmra.mxu0 %v1151
        %v1219 = vpop.f32.mrf.mxu0
        %v1220 = vadd.f32 %v1148, %v1219
        %v1221 = vpop.f32.mrf.mxu0
        %v1222 = vadd.f32 %v1148, %v1221
        %1223 = vdwg.mxu0
        %v1224 = vld [vmem:[%s368] sm:$0xff]
        %v1226 = vcombine.high %v1224, %v1224
        %v1228 = vadd.f32 %v1220, %v1224
        %v1229 = vadd.f32 %v1222, %v1226
        %v1232 = vcombine.low %v1228, %v1229
        %1234 = vst [vmem:[%s373] sm:$0xff] %v1232
        %p1235 = scmp.lt.s32.totalorder %s22, 1
        %s1236 = scalar_select %p1235, %s22, 1
        %s1237 = smul.addr %s1236, 2
        %s1238 = smul.addr %s1237, 4
        %s1239 = scalar_lea.vmem %s10, %s1238
        // Predicated region
        $region65: #{a_call__.1} parent=59 // pred_check
          %p1240 = pneg %p255
        $region66: #{a_call__.1} parent=59 // pred_check_branch
          %1242 = sbr.rel (%p1240) target = $region68
        $region67: #{a_call__.1} parent=59 // pred_region
          _
        $region68: #{a_call__.1} parent=59 // pred_fallthru
          _
      $region60: #{a_call__.1} parent=5 // pred_fallthru
        _
      %p1243 = scmp.le.s32.totalorder 2, %s17
      // Predicated region
      $region69: #{a_call__.1} parent=5 // pred_check
        %p1244 = pneg %p1243
      $region70: #{a_call__.1} parent=5 // pred_check_branch
        %1246 = sbr.rel (%p1244) target = $region72
      $region71: #{a_call__.1} parent=5 // pred_region
        %s1247 = ssub.s32 %s17, 2
        // Predicated region
        $region73: #{a_call__.1} parent=71 // pred_check
          %p1248 = pneg %p261
        $region74: #{a_call__.1} parent=71 // pred_check_branch
          %1250 = sbr.rel (%p1248) target = $region76
        $region75: #{a_call__.1} parent=71 // pred_region
          %p1251 = scmp.lt.s32.totalorder %s23, 1
          %s1252 = scalar_select %p1251, %s23, 1
          %s1253 = smul.addr %s1252, 2
          %s1254 = smul.addr %s1253, 4
          %s1255 = scalar_lea.vmem %s10, %s1254
        $region76: #{a_call__.1} parent=71 // pred_fallthru
          _
      $region72: #{a_call__.1} parent=5 // pred_fallthru
        _
    $region6: #{a_call__.1} parent=1 // loop_footer
      %s21 = sadd.s32 1, %s17
    $region7: #{a_call__.1} parent=1 // loop_footer_branch
      %16 = sbr.rel target = $region3
    $region8: #{a_call__.1} parent=1 // loop_exit
      _
    %1256 = vsyncpa [#allocation4], 1
    %s1257 = scalar_lea.sflag [#allocation4], 1
    %1258 = vsyncpa %s1257, 1

</llo_original>
